<compile_context>
chip_gen: v7x
topology: tpu7x:2x2x1
jax: 0.10.0
libtpu: 0.0.40
codegen_flags: <defaults>
</compile_context>

<pallas_src>
import functools

import jax
import jax.numpy as jnp
from jax.experimental import pallas as pl
from jax.experimental.pallas import tpu as pltpu

NEG_SLOPE = 0.2  # nn.LeakyReLU(0.2)


def _conv3x3x3_lrelu_kernel(x_ref, w_ref, b_ref, o_ref):
    """One (batch item, depth slab) tile of conv3d(k=3, s=1, p=1) + LeakyReLU.

    x_ref : (1, D+2, H+2, (W+2)*C_in)   whole padded batch item (compute dtype)
    w_ref : (3, 3, (W+2)*C_in, W*C_out) banded block-Toeplitz weight
    b_ref : (1, W*C_out)                bias broadcast over the width axis (f32)
    o_ref : (1, TD*H, W*C_out)          lane-dense output slab
    """
    n_rows, n_lane = o_ref.shape[1], o_ref.shape[2]
    h = x_ref.shape[2] - 2
    k_lane = x_ref.shape[3]
    td = n_rows // h

    d0 = pl.program_id(1) * td
    # Single VMEM load of the (TD+2)-plane halo window for this depth slab.
    xw = x_ref[0, pl.ds(d0, td + 2), :, :]              # (TD+2, H+2, K)

    acc = jnp.zeros((n_rows, n_lane), dtype=jnp.float32)
    for kd in range(3):
        for kh in range(3):
            xs = xw[kd:kd + td, kh:kh + h, :]           # (TD, H, K)
            xs = xs.reshape(n_rows, k_lane)
            # kw and C_in are folded into K by the Toeplitz weight -> one MXU
            # matmul per (kd, kh) tap pair, accumulated in f32.
            acc += jnp.dot(xs, w_ref[kd, kh],
                           preferred_element_type=jnp.float32)

    # Epilogue (once per slab): bias + LeakyReLU(0.2) in f32, then cast+store.
    acc += b_ref[...].astype(jnp.float32)               # (1, N) broadcast
    acc = jnp.where(acc >= 0, acc, NEG_SLOPE * acc)
    o_ref[0] = acc.astype(o_ref.dtype)


def _pick_depth_tile(batch, depth, height, min_blocks=4):
    """Largest depth tile dividing `depth` that keeps the output block
    sublane-aligned and leaves >= min_blocks parallel grid blocks."""
    for td in range(depth, 0, -1):
        if depth % td:
            continue
        if (td * height) % 8 and td != depth:
            continue
        if batch * (depth // td) >= min_blocks:
            return td
    return depth  # fallback: full depth per step (block == full dim is exempt)


@functools.partial(jax.jit,
                   static_argnames=("stride", "compute_dtype", "depth_tile"))
def conv_block_forward(x, w, b, stride=1, compute_dtype=jnp.bfloat16,
                       depth_tile=None):
    """ConvBlock.forward(x): LeakyReLU(Conv3d(x, w, b, k=3, stride, pad=1), 0.2).

    x : (B, C_in, D, H, W)       NCDHW, PyTorch layout
    w : (C_out, C_in, 3, 3, 3)   PyTorch Conv3d weight (out, in, kd, kh, kw)
    b : (C_out,)                 bias
    """
    if stride != 1:
        # TODO(synk): strided (stride > 1) conv path not implemented in the kernel.
        raise NotImplementedError("only stride=1 is supported")

    B, C_in, D, H, W = x.shape
    C_out = w.shape[0]
    Wp2 = W + 2
    K_lane = Wp2 * C_in            # input lane axis : (padded width) x C_in
    N_lane = W * C_out             # output lane axis: width x C_out

    td = depth_tile if depth_tile is not None else _pick_depth_tile(B, D, H)
    assert D % td == 0, "depth_tile must divide D"

    # ---- Input: channels-last, zero-padded, (W, C_in) folded into lanes. ----
    x_cl = jnp.transpose(x, (0, 2, 3, 4, 1))                       # (B,D,H,W,C)
    xp = jnp.pad(x_cl, ((0, 0), (1, 1), (1, 1), (1, 1), (0, 0)))   # +1 halo
    x2d = xp.reshape(B, D + 2, H + 2, K_lane).astype(compute_dtype)

    # ---- Weight: banded block-Toeplitz matrix folding kw and C_in into K:
    #   T[kd, kh, wq*C_in + c, w*C_out + co] = w[co, c, kd, kh, wq - w]
    # for 0 <= wq - w <= 2, zero elsewhere.
    # TODO(synk): for very large W*C this weight (~9*(W+2)*C_in*W*C_out elems)
    # should be replaced by width tiling; fine at UNet ConvBlock sizes.
    w_r = jnp.transpose(w, (2, 3, 4, 1, 0))                        # (3,3,3,Ci,Co)
    wq = jnp.arange(Wp2)[:, None]
    wo = jnp.arange(W)[None, :]
    kw_idx = wq - wo                                               # (Wp2, W)
    valid = (kw_idx >= 0) & (kw_idx <= 2)
    t = w_r[:, :, jnp.clip(kw_idx, 0, 2)]                          # (3,3,Wp2,W,Ci,Co)
    t = jnp.where(valid[None, None, :, :, None, None], t, 0)
    t = jnp.transpose(t, (0, 1, 2, 4, 3, 5)).reshape(3, 3, K_lane, N_lane)
    t = t.astype(compute_dtype)

    b_row = jnp.tile(b.astype(jnp.float32), W).reshape(1, N_lane)

    itemsize_c = jnp.dtype(compute_dtype).itemsize
    itemsize_o = jnp.dtype(x.dtype).itemsize

    cost = pl.CostEstimate(
        flops=2 * 9 * B * D * H * K_lane * N_lane,      # actual MXU flops
        transcendentals=0,
        bytes_accessed=(x2d.size * itemsize_c + t.size * itemsize_c
                        + b_row.size * 4 + B * D * H * N_lane * itemsize_o),
    )

    # VMEM: double-buffered input + output blocks + resident weight + headroom,
    # capped at 48 MiB so the same config fits v7x's 64 MiB VMEM.
    x_blk = (D + 2) * (H + 2) * K_lane * itemsize_c
    o_blk = td * H * N_lane * itemsize_o
    vmem_limit = int(min(max(2 * (x_blk + o_blk) + t.size * itemsize_c
                             + (4 << 20), 8 << 20), 48 << 20))

    out2d = pl.pallas_call(
        _conv3x3x3_lrelu_kernel,
        out_shape=jax.ShapeDtypeStruct((B, D * H, N_lane), x.dtype),
        grid=(B, D // td),
        in_specs=[
            # Whole padded batch item; block index depends only on the batch
            # coordinate, so each input plane is DMA'd exactly once per core.
            pl.BlockSpec((1, D + 2, H + 2, K_lane), lambda bi, di: (bi, 0, 0, 0)),
            pl.BlockSpec((3, 3, K_lane, N_lane), lambda bi, di: (0, 0, 0, 0)),
            pl.BlockSpec((1, N_lane), lambda bi, di: (0, 0)),
        ],
        out_specs=pl.BlockSpec((1, td * H, N_lane), lambda bi, di: (bi, di, 0)),
        compiler_params=pltpu.CompilerParams(
            dimension_semantics=("parallel", "parallel"),
            vmem_limit_bytes=vmem_limit),
        cost_estimate=cost,
    )(x2d, t, b_row)

    # (B, D*H, W*C_out) -> (B, C_out, D, H, W)  (PyTorch NCDHW layout).
    out = out2d.reshape(B, D, H, W, C_out)
    return jnp.transpose(out, (0, 4, 1, 2, 3))


if __name__ == "__main__":
    B, C_in, C_out = 2, 4, 8
    D, H, W = 8, 16, 16

    key = jax.random.PRNGKey(0)
    kx, kw, kb = jax.random.split(key, 3)

    fan_in = C_in * 27
    bound = 1.0 / (fan_in ** 0.5)
    x = jax.random.normal(kx, (B, C_in, D, H, W), dtype=jnp.float32)
    w = jax.random.uniform(kw, (C_out, C_in, 3, 3, 3), minval=-bound,
                           maxval=bound, dtype=jnp.float32)
    b = jax.random.uniform(kb, (C_out,), minval=-bound, maxval=bound,
                           dtype=jnp.float32)

    out = conv_block_forward(x, w, b)
    out = jax.block_until_ready(out)
    assert out.shape == (B, C_out, D, H, W)

    # Pure-JAX reference (conv3d + LeakyReLU) using the same bf16 input/weight
    # rounding and f32 accumulation as the kernel's compute path.
    x_cl = jnp.transpose(x, (0, 2, 3, 4, 1)).astype(jnp.bfloat16)
    w_r = jnp.transpose(w, (2, 3, 4, 1, 0)).astype(jnp.bfloat16)
    ref = jax.lax.conv_general_dilated(
        x_cl, w_r, window_strides=(1, 1, 1),
        padding=((1, 1), (1, 1), (1, 1)),
        dimension_numbers=("NDHWC", "DHWIO", "NDHWC"),
        preferred_element_type=jnp.float32,
        precision=jax.lax.Precision.HIGHEST) + b.astype(jnp.float32)
    ref = jnp.where(ref >= 0, ref, NEG_SLOPE * ref)
    ref = jnp.transpose(ref, (0, 4, 1, 2, 3)).astype(x.dtype)

    assert jnp.allclose(out, ref, atol=1e-2, rtol=1e-2), (
        float(jnp.max(jnp.abs(out - ref))))

    print("KERNEL_OK")
</pallas_src>

<mosaic_0001>
module attributes {stable_mosaic.version = 11 : i64} {
  func.func @_conv3x3x3_lrelu_kernel(%arg0: i32, %arg1: i32, %arg2: memref<1x10x18x72xbf16, #tpu.memory_space<vmem>>, %arg3: memref<3x3x72x128xbf16, #tpu.memory_space<vmem>>, %arg4: memref<1x128xf32, #tpu.memory_space<vmem>>, %arg5: memref<1x64x128xf32, #tpu.memory_space<vmem>>) attributes {dimension_semantics = [#tpu.dimension_semantics<parallel>, #tpu.dimension_semantics<parallel>], iteration_bounds = array<i64: 2, 2>, scalar_prefetch = 0 : i64, scratch_operands = 0 : i64, tpu.core_type = #tpu.core_type<tc>, window_params = [{transform_indices = @transform_0, window_bounds = array<i64: 1, 10, 18, 72>}, {pipeline_mode = #tpu.pipeline_mode<synchronous>, transform_indices = @transform_1, window_bounds = array<i64: 3, 3, 72, 128>}, {pipeline_mode = #tpu.pipeline_mode<synchronous>, transform_indices = @transform_2, window_bounds = array<i64: 1, 128>}, {transform_indices = @transform_3, window_bounds = array<i64: 1, 64, 128>}]} {
    %c4_i32 = arith.constant 4 : i32
    %0 = arith.muli %arg1, %c4_i32 : i32
    %c0 = arith.constant 0 : index
    %1 = arith.index_cast %0 : i32 to index
    %c0_0 = arith.constant 0 : index
    %c0_1 = arith.constant 0 : index
    %2 = vector.load %arg2[%c0, %1, %c0_0, %c0_1] : memref<1x10x18x72xbf16, #tpu.memory_space<vmem>>, vector<1x6x18x72xbf16>
    %3 = vector.shape_cast %2 : vector<1x6x18x72xbf16> to vector<6x18x72xbf16>
    %cst = arith.constant 0.000000e+00 : f32
    %4 = vector.broadcast %cst : f32 to vector<64x128xf32>
    %5 = vector.extract_strided_slice %3 {offsets = [0, 0, 0], sizes = [4, 16, 72], strides = [1, 1, 1]} : vector<6x18x72xbf16> to vector<4x16x72xbf16>
    %6 = vector.shape_cast %5 : vector<4x16x72xbf16> to vector<64x72xbf16>
    %c0_2 = arith.constant 0 : index
    %c0_3 = arith.constant 0 : index
    %c0_4 = arith.constant 0 : index
    %c0_5 = arith.constant 0 : index
    %7 = vector.load %arg3[%c0_2, %c0_3, %c0_4, %c0_5] : memref<3x3x72x128xbf16, #tpu.memory_space<vmem>>, vector<1x1x72x128xbf16>
    %8 = vector.shape_cast %7 : vector<1x1x72x128xbf16> to vector<72x128xbf16>
    %cst_6 = arith.constant dense<0.000000e+00> : vector<64x128xf32>
    %9 = tpu.matmul %6, %8, %cst_6 {dimension_numbers = #tpu.dot_dimension_numbers<[1], [0], [0], [1], [0, 0, 1, 1], [], []>} : vector<64x72xbf16>, vector<72x128xbf16>, vector<64x128xf32> -> vector<64x128xf32>
    %10 = arith.addf %4, %9 : vector<64x128xf32>
    %11 = vector.extract_strided_slice %3 {offsets = [0, 1, 0], sizes = [4, 16, 72], strides = [1, 1, 1]} : vector<6x18x72xbf16> to vector<4x16x72xbf16>
    %12 = vector.shape_cast %11 : vector<4x16x72xbf16> to vector<64x72xbf16>
    %c0_7 = arith.constant 0 : index
    %c1 = arith.constant 1 : index
    %c0_8 = arith.constant 0 : index
    %c0_9 = arith.constant 0 : index
    %13 = vector.load %arg3[%c0_7, %c1, %c0_8, %c0_9] : memref<3x3x72x128xbf16, #tpu.memory_space<vmem>>, vector<1x1x72x128xbf16>
    %14 = vector.shape_cast %13 : vector<1x1x72x128xbf16> to vector<72x128xbf16>
    %cst_10 = arith.constant dense<0.000000e+00> : vector<64x128xf32>
    %15 = tpu.matmul %12, %14, %cst_10 {dimension_numbers = #tpu.dot_dimension_numbers<[1], [0], [0], [1], [0, 0, 1, 1], [], []>} : vector<64x72xbf16>, vector<72x128xbf16>, vector<64x128xf32> -> vector<64x128xf32>
    %16 = arith.addf %10, %15 : vector<64x128xf32>
    %17 = vector.extract_strided_slice %3 {offsets = [0, 2, 0], sizes = [4, 16, 72], strides = [1, 1, 1]} : vector<6x18x72xbf16> to vector<4x16x72xbf16>
    %18 = vector.shape_cast %17 : vector<4x16x72xbf16> to vector<64x72xbf16>
    %c0_11 = arith.constant 0 : index
    %c2 = arith.constant 2 : index
    %c0_12 = arith.constant 0 : index
    %c0_13 = arith.constant 0 : index
    %19 = vector.load %arg3[%c0_11, %c2, %c0_12, %c0_13] : memref<3x3x72x128xbf16, #tpu.memory_space<vmem>>, vector<1x1x72x128xbf16>
    %20 = vector.shape_cast %19 : vector<1x1x72x128xbf16> to vector<72x128xbf16>
    %cst_14 = arith.constant dense<0.000000e+00> : vector<64x128xf32>
    %21 = tpu.matmul %18, %20, %cst_14 {dimension_numbers = #tpu.dot_dimension_numbers<[1], [0], [0], [1], [0, 0, 1, 1], [], []>} : vector<64x72xbf16>, vector<72x128xbf16>, vector<64x128xf32> -> vector<64x128xf32>
    %22 = arith.addf %16, %21 : vector<64x128xf32>
    %23 = vector.extract_strided_slice %3 {offsets = [1, 0, 0], sizes = [4, 16, 72], strides = [1, 1, 1]} : vector<6x18x72xbf16> to vector<4x16x72xbf16>
    %24 = vector.shape_cast %23 : vector<4x16x72xbf16> to vector<64x72xbf16>
    %c1_15 = arith.constant 1 : index
    %c0_16 = arith.constant 0 : index
    %c0_17 = arith.constant 0 : index
    %c0_18 = arith.constant 0 : index
    %25 = vector.load %arg3[%c1_15, %c0_16, %c0_17, %c0_18] : memref<3x3x72x128xbf16, #tpu.memory_space<vmem>>, vector<1x1x72x128xbf16>
    %26 = vector.shape_cast %25 : vector<1x1x72x128xbf16> to vector<72x128xbf16>
    %cst_19 = arith.constant dense<0.000000e+00> : vector<64x128xf32>
    %27 = tpu.matmul %24, %26, %cst_19 {dimension_numbers = #tpu.dot_dimension_numbers<[1], [0], [0], [1], [0, 0, 1, 1], [], []>} : vector<64x72xbf16>, vector<72x128xbf16>, vector<64x128xf32> -> vector<64x128xf32>
    %28 = arith.addf %22, %27 : vector<64x128xf32>
    %29 = vector.extract_strided_slice %3 {offsets = [1, 1, 0], sizes = [4, 16, 72], strides = [1, 1, 1]} : vector<6x18x72xbf16> to vector<4x16x72xbf16>
    %30 = vector.shape_cast %29 : vector<4x16x72xbf16> to vector<64x72xbf16>
    %c1_20 = arith.constant 1 : index
    %c1_21 = arith.constant 1 : index
    %c0_22 = arith.constant 0 : index
    %c0_23 = arith.constant 0 : index
    %31 = vector.load %arg3[%c1_20, %c1_21, %c0_22, %c0_23] : memref<3x3x72x128xbf16, #tpu.memory_space<vmem>>, vector<1x1x72x128xbf16>
    %32 = vector.shape_cast %31 : vector<1x1x72x128xbf16> to vector<72x128xbf16>
    %cst_24 = arith.constant dense<0.000000e+00> : vector<64x128xf32>
    %33 = tpu.matmul %30, %32, %cst_24 {dimension_numbers = #tpu.dot_dimension_numbers<[1], [0], [0], [1], [0, 0, 1, 1], [], []>} : vector<64x72xbf16>, vector<72x128xbf16>, vector<64x128xf32> -> vector<64x128xf32>
    %34 = arith.addf %28, %33 : vector<64x128xf32>
    %35 = vector.extract_strided_slice %3 {offsets = [1, 2, 0], sizes = [4, 16, 72], strides = [1, 1, 1]} : vector<6x18x72xbf16> to vector<4x16x72xbf16>
    %36 = vector.shape_cast %35 : vector<4x16x72xbf16> to vector<64x72xbf16>
    %c1_25 = arith.constant 1 : index
    %c2_26 = arith.constant 2 : index
    %c0_27 = arith.constant 0 : index
    %c0_28 = arith.constant 0 : index
    %37 = vector.load %arg3[%c1_25, %c2_26, %c0_27, %c0_28] : memref<3x3x72x128xbf16, #tpu.memory_space<vmem>>, vector<1x1x72x128xbf16>
    %38 = vector.shape_cast %37 : vector<1x1x72x128xbf16> to vector<72x128xbf16>
    %cst_29 = arith.constant dense<0.000000e+00> : vector<64x128xf32>
    %39 = tpu.matmul %36, %38, %cst_29 {dimension_numbers = #tpu.dot_dimension_numbers<[1], [0], [0], [1], [0, 0, 1, 1], [], []>} : vector<64x72xbf16>, vector<72x128xbf16>, vector<64x128xf32> -> vector<64x128xf32>
    %40 = arith.addf %34, %39 : vector<64x128xf32>
    %41 = vector.extract_strided_slice %3 {offsets = [2, 0, 0], sizes = [4, 16, 72], strides = [1, 1, 1]} : vector<6x18x72xbf16> to vector<4x16x72xbf16>
    %42 = vector.shape_cast %41 : vector<4x16x72xbf16> to vector<64x72xbf16>
    %c2_30 = arith.constant 2 : index
    %c0_31 = arith.constant 0 : index
    %c0_32 = arith.constant 0 : index
    %c0_33 = arith.constant 0 : index
    %43 = vector.load %arg3[%c2_30, %c0_31, %c0_32, %c0_33] : memref<3x3x72x128xbf16, #tpu.memory_space<vmem>>, vector<1x1x72x128xbf16>
    %44 = vector.shape_cast %43 : vector<1x1x72x128xbf16> to vector<72x128xbf16>
    %cst_34 = arith.constant dense<0.000000e+00> : vector<64x128xf32>
    %45 = tpu.matmul %42, %44, %cst_34 {dimension_numbers = #tpu.dot_dimension_numbers<[1], [0], [0], [1], [0, 0, 1, 1], [], []>} : vector<64x72xbf16>, vector<72x128xbf16>, vector<64x128xf32> -> vector<64x128xf32>
    %46 = arith.addf %40, %45 : vector<64x128xf32>
    %47 = vector.extract_strided_slice %3 {offsets = [2, 1, 0], sizes = [4, 16, 72], strides = [1, 1, 1]} : vector<6x18x72xbf16> to vector<4x16x72xbf16>
    %48 = vector.shape_cast %47 : vector<4x16x72xbf16> to vector<64x72xbf16>
    %c2_35 = arith.constant 2 : index
    %c1_36 = arith.constant 1 : index
    %c0_37 = arith.constant 0 : index
    %c0_38 = arith.constant 0 : index
    %49 = vector.load %arg3[%c2_35, %c1_36, %c0_37, %c0_38] : memref<3x3x72x128xbf16, #tpu.memory_space<vmem>>, vector<1x1x72x128xbf16>
    %50 = vector.shape_cast %49 : vector<1x1x72x128xbf16> to vector<72x128xbf16>
    %cst_39 = arith.constant dense<0.000000e+00> : vector<64x128xf32>
    %51 = tpu.matmul %48, %50, %cst_39 {dimension_numbers = #tpu.dot_dimension_numbers<[1], [0], [0], [1], [0, 0, 1, 1], [], []>} : vector<64x72xbf16>, vector<72x128xbf16>, vector<64x128xf32> -> vector<64x128xf32>
    %52 = arith.addf %46, %51 : vector<64x128xf32>
    %53 = vector.extract_strided_slice %3 {offsets = [2, 2, 0], sizes = [4, 16, 72], strides = [1, 1, 1]} : vector<6x18x72xbf16> to vector<4x16x72xbf16>
    %54 = vector.shape_cast %53 : vector<4x16x72xbf16> to vector<64x72xbf16>
    %c2_40 = arith.constant 2 : index
    %c2_41 = arith.constant 2 : index
    %c0_42 = arith.constant 0 : index
    %c0_43 = arith.constant 0 : index
    %55 = vector.load %arg3[%c2_40, %c2_41, %c0_42, %c0_43] : memref<3x3x72x128xbf16, #tpu.memory_space<vmem>>, vector<1x1x72x128xbf16>
    %56 = vector.shape_cast %55 : vector<1x1x72x128xbf16> to vector<72x128xbf16>
    %cst_44 = arith.constant dense<0.000000e+00> : vector<64x128xf32>
    %57 = tpu.matmul %54, %56, %cst_44 {dimension_numbers = #tpu.dot_dimension_numbers<[1], [0], [0], [1], [0, 0, 1, 1], [], []>} : vector<64x72xbf16>, vector<72x128xbf16>, vector<64x128xf32> -> vector<64x128xf32>
    %58 = arith.addf %52, %57 : vector<64x128xf32>
    %c0_45 = arith.constant 0 : index
    %c0_46 = arith.constant 0 : index
    %59 = vector.load %arg4[%c0_45, %c0_46] : memref<1x128xf32, #tpu.memory_space<vmem>>, vector<1x128xf32>
    %60 = vector.broadcast %59 : vector<1x128xf32> to vector<64x128xf32>
    %61 = arith.addf %58, %60 : vector<64x128xf32>
    %cst_47 = arith.constant 0.000000e+00 : f32
    %62 = vector.broadcast %cst_47 : f32 to vector<64x128xf32>
    %63 = arith.cmpf oge, %61, %62 : vector<64x128xf32>
    %cst_48 = arith.constant 2.000000e-01 : f32
    %64 = vector.broadcast %cst_48 : f32 to vector<64x128xf32>
    %65 = arith.mulf %64, %61 : vector<64x128xf32>
    %66 = arith.select %63, %61, %65 : vector<64x128xi1>, vector<64x128xf32>
    %c0_49 = arith.constant 0 : index
    %c0_50 = arith.constant 0 : index
    %c0_51 = arith.constant 0 : index
    %67 = vector.load %arg5[%c0_49, %c0_50, %c0_51] : memref<1x64x128xf32, #tpu.memory_space<vmem>>, vector<1x64x128xf32>
    %68 = vector.shape_cast %67 : vector<1x64x128xf32> to vector<64x128xf32>
    %69 = vector.shape_cast %66 : vector<64x128xf32> to vector<1x64x128xf32>
    tpu.vector_store %arg5[%c0_49, %c0_50, %c0_51], %69 {strides = array<i32>} : memref<1x64x128xf32, #tpu.memory_space<vmem>>, vector<1x64x128xf32>,
    return
  }
  func.func @transform_0(%arg0: i32, %arg1: i32) -> (i32, i32, i32, i32) {
    %c0_i32 = arith.constant 0 : i32
    %c0_i32_0 = arith.constant 0 : i32
    %c0_i32_1 = arith.constant 0 : i32
    %c0_i32_2 = arith.constant 0 : i32
    return %arg0, %c0_i32, %c0_i32_0, %c0_i32_1 : i32, i32, i32, i32
  }
  func.func @transform_1(%arg0: i32, %arg1: i32) -> (i32, i32, i32, i32) {
    %c0_i32 = arith.constant 0 : i32
    %c0_i32_0 = arith.constant 0 : i32
    %c0_i32_1 = arith.constant 0 : i32
    %c0_i32_2 = arith.constant 0 : i32
    %c0_i32_3 = arith.constant 0 : i32
    return %c0_i32, %c0_i32_0, %c0_i32_1, %c0_i32_2 : i32, i32, i32, i32
  }
  func.func @transform_2(%arg0: i32, %arg1: i32) -> (i32, i32) {
    %c0_i32 = arith.constant 0 : i32
    %c0_i32_0 = arith.constant 0 : i32
    %c0_i32_1 = arith.constant 0 : i32
    return %c0_i32, %c0_i32_0 : i32, i32
  }
  func.func @transform_3(%arg0: i32, %arg1: i32) -> (i32, i32, i32) {
    %c0_i32 = arith.constant 0 : i32
    %c0_i32_0 = arith.constant 0 : i32
    return %arg0, %arg1, %c0_i32 : i32, i32, i32
  }
}

</mosaic_0001>

<llo_original>
// kernel: tile.8
$region0: #{tile.8}
  #allocation0 [shape = 's32[1]{0}', space=sflag, size = 0x4, scoped, tag = 'scoped memory for tile.8']
  %s0 = inlined_call_operand.vmem [shape: f32[8], index: 0, kind: input, shape index: {}]
  %s1 = inlined_call_operand.vmem [shape: f32[16,8], index: 1, kind: output, shape index: {}]
  // Predicated region
  $region2: #{tile.8} parent=0 // pred_check
    _
  $region3: #{tile.8} parent=0 // pred_check_branch
    %3 = sbr.rel (0) target = $region5
  $region4: #{tile.8} parent=0 // pred_region
    _
  $region5: #{tile.8} parent=0 // pred_fallthru
    _
  %v4 = vld [vmem:[%s0] ss:$0 sm:$0xff]
  %5 = vst [vmem:[%s1] sm:$0xff] %v4
  %s6 = scalar_lea.vmem %s1, 8
  %7 = vst [vmem:[%s6] sm:$0xff] %v4

// kernel: tile.9
$region0: #{tile.9}
  %s0 = inlined_call_operand.vmem [shape: f32[16,8], index: 0, kind: input, shape index: {}]
  %s1 = inlined_call_operand.vmem [shape: f32[1,128], index: 1, kind: output, shape index: {}]
  $region1: #{tile.9} parent=0
    #allocation0 [shape = 'u8[4096]{0}', space=vmem, size = 0x1000, scoped, tag = 'scoped mem for output reshape']
    %v2 = vld [vmem:[%s0] sm:$0x1]
    %vm3 = vcmask 64512
    %4 = vst.msk [vmem:[#allocation0] sm:$0x1] %vm3, %v2
    %s5 = scalar_lea.vmem %s0, 15
    %v6 = vld [vmem:[%s5] sm:$0x1]
    %7 = vrot.lane.b32.xlu0 %v6, 120
    %v8 = vpop.permute.xlu0 %7
    %vm9 = vcmask 1048512
    %10 = vst.msk [vmem:[#allocation0] sm:$0x1] %vm9, %v8
    %s11 = scalar_lea.vmem %s0, 14
    %v12 = vld [vmem:[%s11] sm:$0x1]
    %13 = vrot.lane.b32.xlu0 %v12, 112
    %v14 = vpop.permute.xlu0 %13
    %vm15 = vcmask 982912
    %16 = vst.msk [vmem:[#allocation0] sm:$0x1] %vm15, %v14
    %s17 = scalar_lea.vmem %s0, 13
    %v18 = vld [vmem:[%s17] sm:$0x1]
    %19 = vrot.lane.b32.xlu0 %v18, 104
    %v20 = vpop.permute.xlu0 %19
    %vm21 = vcmask 917312
    %22 = vst.msk [vmem:[#allocation0] sm:$0x1] %vm21, %v20
    %s23 = scalar_lea.vmem %s0, 12
    %v24 = vld [vmem:[%s23] sm:$0x1]
    %25 = vrot.lane.b32.xlu0 %v24, 96
    %v26 = vpop.permute.xlu0 %25
    %vm27 = vcmask 851712
    %28 = vst.msk [vmem:[#allocation0] sm:$0x1] %vm27, %v26
    %s29 = scalar_lea.vmem %s0, 11
    %v30 = vld [vmem:[%s29] sm:$0x1]
    %31 = vrot.lane.b32.xlu0 %v30, 88
    %v32 = vpop.permute.xlu0 %31
    %vm33 = vcmask 786112
    %34 = vst.msk [vmem:[#allocation0] sm:$0x1] %vm33, %v32
    %s35 = scalar_lea.vmem %s0, 10
    %v36 = vld [vmem:[%s35] sm:$0x1]
    %37 = vrot.lane.b32.xlu0 %v36, 80
    %v38 = vpop.permute.xlu0 %37
    %vm39 = vcmask 720512
    %40 = vst.msk [vmem:[#allocation0] sm:$0x1] %vm39, %v38
    %s41 = scalar_lea.vmem %s0, 9
    %v42 = vld [vmem:[%s41] sm:$0x1]
    %43 = vrot.lane.b32.xlu0 %v42, 72
    %v44 = vpop.permute.xlu0 %43
    %vm45 = vcmask 654912
    %46 = vst.msk [vmem:[#allocation0] sm:$0x1] %vm45, %v44
    %s47 = scalar_lea.vmem %s0, 8
    %v48 = vld [vmem:[%s47] sm:$0x1]
    %49 = vrot.lane.b32.xlu0 %v48, 64
    %v50 = vpop.permute.xlu0 %49
    %vm51 = vcmask 589312
    %52 = vst.msk [vmem:[#allocation0] sm:$0x1] %vm51, %v50
    %s53 = scalar_lea.vmem %s0, 7
    %v54 = vld [vmem:[%s53] sm:$0x1]
    %55 = vrot.lane.b32.xlu0 %v54, 56
    %v56 = vpop.permute.xlu0 %55
    %vm57 = vcmask 523712
    %58 = vst.msk [vmem:[#allocation0] sm:$0x1] %vm57, %v56
    %s59 = scalar_lea.vmem %s0, 6
    %v60 = vld [vmem:[%s59] sm:$0x1]
    %61 = vrot.lane.b32.xlu0 %v60, 48
    %v62 = vpop.permute.xlu0 %61
    %vm63 = vcmask 458112
    %64 = vst.msk [vmem:[#allocation0] sm:$0x1] %vm63, %v62
    %s65 = scalar_lea.vmem %s0, 5
    %v66 = vld [vmem:[%s65] sm:$0x1]
    %67 = vrot.lane.b32.xlu0 %v66, 40
    %v68 = vpop.permute.xlu0 %67
    %vm69 = vcmask 392512
    %70 = vst.msk [vmem:[#allocation0] sm:$0x1] %vm69, %v68
    %s71 = scalar_lea.vmem %s0, 4
    %v72 = vld [vmem:[%s71] sm:$0x1]
    %73 = vrot.lane.b32.xlu0 %v72, 32
    %v74 = vpop.permute.xlu0 %73
    %vm75 = vcmask 326912
    %76 = vst.msk [vmem:[#allocation0] sm:$0x1] %vm75, %v74
    %s77 = scalar_lea.vmem %s0, 3
    %v78 = vld [vmem:[%s77] sm:$0x1]
    %79 = vrot.lane.b32.xlu0 %v78, 24
    %v80 = vpop.permute.xlu0 %79
    %vm81 = vcmask 261312
    %82 = vst.msk [vmem:[#allocation0] sm:$0x1] %vm81, %v80
    %s83 = scalar_lea.vmem %s0, 2
    %v84 = vld [vmem:[%s83] sm:$0x1]
    %85 = vrot.lane.b32.xlu0 %v84, 16
    %v86 = vpop.permute.xlu0 %85
    %vm87 = vcmask 195712
    %88 = vst.msk [vmem:[#allocation0] sm:$0x1] %vm87, %v86
    %s89 = scalar_lea.vmem %s0, 1
    %v90 = vld [vmem:[%s89] sm:$0x1]
    %91 = vrot.lane.b32.xlu0 %v90, 8
    %v92 = vpop.permute.xlu0 %91
    %vm93 = vcmask 130112
    %94 = vst.msk [vmem:[#allocation0] sm:$0x1] %vm93, %v92
    %s96 = sshllo.u32 0, 1
    %v98 = vld [vmem:[#allocation0] sm:%s96]
    %s99 = sshllo.u32 0, 1
    %100 = vst [vmem:[%s1] sm:%s99] %v98

// kernel: conv_block_forward.1
$region0: #{conv_block_forward.1}
  #allocation0 [shape = 'u32[]', space=smem, size = 0x4, offset = 0x4, fixed_abs, tag = 'smem constant byte address 0x4 - core index']
  #allocation1 [shape = 'u32[144,128]{1,0:T(1,128)}', space=vmem, size = 0x12000, scoped, tag = 'internal scratch']
  %s0 = inlined_call_operand.vmem [shape: bf16[2,10,18,72], index: 0, kind: input, shape index: {}]
  %s1 = inlined_call_operand.vmem [shape: bf16[3,3,72,128], index: 1, kind: input, shape index: {}]
  %s2 = inlined_call_operand.vmem [shape: f32[1,128], index: 2, kind: input, shape index: {}]
  %s3 = inlined_call_operand.vmem [shape: f32[2,128,128], index: 3, kind: output, shape index: {}]
  %s4 = sld [smem:[#allocation0]]
  $region45: #{conv_block_forward.1} parent=0
    _
  %s6 = ssub.s32 1, %s4
  %s7 = scalar_select 0, %s6, %s4
  loop: start=0, step=1, limit=6
  $region2: #{conv_block_forward.1} parent=0 // loop_pre_header
    _
  $region3: #{conv_block_forward.1} parent=0 // loop_header
    %s9 = sphi 0, %s13
    %p10 = scmp.ge.s32.totalorder %s9, 6
    %s16 = sphi 0, %s28
    %s17 = sphi 0, %s24
    %s18 = sphi 0, %s16
    %s19 = sphi 0, %s17
    %s20 = sphi 0, %s18
    %s21 = sphi 0, %s19
    %s31 = sphi 0, %s33
    %s34 = sphi 0, %s31
    %s35 = sphi 0, %s34
    %s51 = sphi 0, %s35
    %s55 = sphi 0, %s55
    %s57 = sphi 0, %s55
    %s58 = sphi 0, %s57
    %s72 = sphi 0, %s58
    %s76 = sphi 0, %s76
    %s78 = sphi 0, %s76
    %s79 = sphi 0, %s78
    %s93 = sphi 0, %s79
    %s101 = sphi 0, %s103
    %s104 = sphi 0, %s101
    %s105 = sphi 0, %s104
    %s121 = sphi 0, %s105
  $region4: #{conv_block_forward.1} parent=0 // loop_header_branch
    %12 = sbr.rel (%p10) target = $region8
  $region5: #{conv_block_forward.1} parent=0 // loop_body
    %s14 = ssub.s32 %s9, 1
    %s15 = ssub.s32 %s9, 2
    %s22 = sadd.s32 1, %s17
    %p23 = scmp.ge.s32.totalorder %s22, 2
    %s24 = scalar_select %p23, 0, %s22
    %s25 = sadd.s32 1, %s16
    %s26 = scalar_select %p23, %s25, %s16
    %p27 = scmp.ge.s32.totalorder %s26, 2
    %s28 = scalar_select %p27, 0, %s26
    %s29 = ssub.s32 %s16, %s28
    %p30 = scmp.eq.s32.totalorder %s29, 0
    %s32 = sadd.s32 %s31, 1
    %s33 = scalar_select %p30, %s31, %s32
    %p36 = pneg %p30
    %p37 = scmp.eq.s32.totalorder %s9, 3
    %p38 = por %p36, %p37
    %p39 = scmp.ne.s32.totalorder %s31, %s34
    %p40 = scmp.eq.s32.totalorder %s9, 0
    %p41 = por %p39, %p40
    %p42 = scmp.ne.s32.totalorder %s31, %s34
    %p43 = scmp.eq.s32.totalorder %s14, 3
    %p44 = por %p42, %p43
    %p45 = scmp.ne.s32.totalorder %s34, %s35
    %p46 = scmp.eq.s32.totalorder %s14, 0
    %p47 = por %p45, %p46
    %p48 = scmp.ne.s32.totalorder %s34, %s35
    %p49 = scmp.eq.s32.totalorder %s15, 3
    %p50 = por %p48, %p49
    %p52 = scmp.ne.s32.totalorder %s35, %s51
    %p53 = scmp.eq.s32.totalorder %s15, 0
    %p54 = por %p52, %p53
    %s56 = sadd.s32 %s55, 1
    %p59 = scmp.eq.s32.totalorder %s9, 3
    %p60 = scmp.ne.s32.totalorder %s55, %s57
    %p61 = scmp.eq.s32.totalorder %s9, 0
    %p62 = por %p60, %p61
    %p63 = scmp.ne.s32.totalorder %s55, %s57
    %p64 = scmp.eq.s32.totalorder %s14, 3
    %p65 = por %p63, %p64
    %p66 = scmp.ne.s32.totalorder %s57, %s58
    %p67 = scmp.eq.s32.totalorder %s14, 0
    %p68 = por %p66, %p67
    %p69 = scmp.ne.s32.totalorder %s57, %s58
    %p70 = scmp.eq.s32.totalorder %s15, 3
    %p71 = por %p69, %p70
    %p73 = scmp.ne.s32.totalorder %s58, %s72
    %p74 = scmp.eq.s32.totalorder %s15, 0
    %p75 = por %p73, %p74
    %s77 = sadd.s32 %s76, 1
    %p80 = scmp.eq.s32.totalorder %s9, 3
    %p81 = scmp.ne.s32.totalorder %s76, %s78
    %p82 = scmp.eq.s32.totalorder %s9, 0
    %p83 = por %p81, %p82
    %p84 = scmp.ne.s32.totalorder %s76, %s78
    %p85 = scmp.eq.s32.totalorder %s14, 3
    %p86 = por %p84, %p85
    %p87 = scmp.ne.s32.totalorder %s78, %s79
    %p88 = scmp.eq.s32.totalorder %s14, 0
    %p89 = por %p87, %p88
    %p90 = scmp.ne.s32.totalorder %s78, %s79
    %p91 = scmp.eq.s32.totalorder %s15, 3
    %p92 = por %p90, %p91
    %p94 = scmp.ne.s32.totalorder %s79, %s93
    %p95 = scmp.eq.s32.totalorder %s15, 0
    %p96 = por %p94, %p95
    %s97 = ssub.s32 %s16, %s28
    %s98 = ssub.s32 %s17, %s24
    %s99 = sor.u32 %s97, %s98
    %p100 = scmp.eq.s32.totalorder %s99, 0
    %s102 = sadd.s32 %s101, 1
    %s103 = scalar_select %p100, %s101, %s102
    %p106 = pneg %p100
    %p107 = scmp.eq.s32.totalorder %s9, 3
    %p108 = por %p106, %p107
    %p109 = scmp.ne.s32.totalorder %s101, %s104
    %p110 = scmp.eq.s32.totalorder %s9, 0
    %p111 = por %p109, %p110
    %p112 = scmp.ne.s32.totalorder %s101, %s104
    %p113 = scmp.eq.s32.totalorder %s14, 3
    %p114 = por %p112, %p113
    %p115 = scmp.ne.s32.totalorder %s104, %s105
    %p116 = scmp.eq.s32.totalorder %s14, 0
    %p117 = por %p115, %p116
    %p118 = scmp.ne.s32.totalorder %s104, %s105
    %p119 = scmp.eq.s32.totalorder %s15, 3
    %p120 = por %p118, %p119
    %p122 = scmp.ne.s32.totalorder %s105, %s121
    %p123 = scmp.eq.s32.totalorder %s15, 0
    %p124 = por %p122, %p123
    %p125 = scmp.le.s32.totalorder 1, %s9
    %p126 = scmp.lt.s32.totalorder %s9, 5
    %p127 = pnand %p125, %p126
    %p128 = pneg %p127
    // Predicated region
    $region9: #{conv_block_forward.1} parent=5 // pred_check
      _
    $region10: #{conv_block_forward.1} parent=5 // pred_check_branch
      %130 = sbr.rel (%p127) target = $region12
    $region11: #{conv_block_forward.1} parent=5 // pred_region
      %s131 = ssub.s32 %s9, 1
      // Predicated region
      $region13: #{conv_block_forward.1} parent=11 // pred_check
        %p132 = pneg %p68
      $region14: #{conv_block_forward.1} parent=11 // pred_check_branch
        %134 = sbr.rel (%p132) target = $region16
      $region15: #{conv_block_forward.1} parent=11 // pred_region
        _
      $region16: #{conv_block_forward.1} parent=11 // pred_fallthru
        _
      // Predicated region
      $region17: #{conv_block_forward.1} parent=11 // pred_check
        %p135 = pneg %p89
      $region18: #{conv_block_forward.1} parent=11 // pred_check_branch
        %137 = sbr.rel (%p135) target = $region20
      $region19: #{conv_block_forward.1} parent=11 // pred_region
        _
      $region20: #{conv_block_forward.1} parent=11 // pred_fallthru
        _
    $region12: #{conv_block_forward.1} parent=5 // pred_fallthru
      _
    %p138 = scmp.lt.s32.totalorder %s9, 4
    // Predicated region
    $region21: #{conv_block_forward.1} parent=5 // pred_check
      %p139 = pneg %p138
    $region22: #{conv_block_forward.1} parent=5 // pred_check_branch
      %141 = sbr.rel (%p139) target = $region24
    $region23: #{conv_block_forward.1} parent=5 // pred_region
      // Predicated region
      $region25: #{conv_block_forward.1} parent=23 // pred_check
        %p142 = pneg %p41
      $region26: #{conv_block_forward.1} parent=23 // pred_check_branch
        %144 = sbr.rel (%p142) target = $region28
      $region27: #{conv_block_forward.1} parent=23 // pred_region
        %p145 = scmp.lt.s32.totalorder %s16, 1
        %s146 = scalar_select %p145, %s16, 1
        %s147 = smul.addr %s146, 30
        %s148 = smul.addr %s147, 4
        %s149 = scalar_lea.vmem %s0, %s148
      $region28: #{conv_block_forward.1} parent=23 // pred_fallthru
        _
    $region24: #{conv_block_forward.1} parent=5 // pred_fallthru
      _
    %p150 = scmp.le.s32.totalorder 1, %s9
    %p151 = scmp.lt.s32.totalorder %s9, 5
    %p152 = pnand %p150, %p151
    %p153 = pneg %p152
    // Predicated region
    $region29: #{conv_block_forward.1} parent=5 // pred_check
      _
    $region30: #{conv_block_forward.1} parent=5 // pred_check_branch
      %155 = sbr.rel (%p152) target = $region32
    $region31: #{conv_block_forward.1} parent=5 // pred_region
      %s156 = ssub.s32 %s9, 1
      %p157 = scmp.lt.s32.totalorder %s18, 1
      %s158 = scalar_select %p157, %s18, 1
      %s159 = smul.addr %s158, 30
      %s160 = smul.addr %s159, 4
      %s161 = scalar_lea.vmem %s0, %s160
      %p162 = pneg %p47
      %p163 = pneg %p44
      %p164 = pneg %p68
      %p165 = pneg %p65
      %p166 = pneg %p89
      %p167 = pneg %p86
      %p168 = pneg %p117
      %p169 = pneg %p114
      %s170 = smul.u32 8, %s19
      %p171 = scmp.lt.s32.totalorder %s18, 1
      %s172 = scalar_select %p171, %s18, 1
      %p173 = scmp.lt.s32.totalorder %s170, 15
      %s174 = scalar_select %p173, %s170, 15
      %s175 = smul.addr %s172, 16
      %s176 = sadd.s32 %s174, %s175
      %s177 = smul.addr %s176, 8
      %s178 = scalar_lea.vmem %s3, %s177
      %p179 = scmp.lt.s32.totalorder %s18, 1
      %s180 = scalar_select %p179, %s18, 1
      %s181 = smul.addr %s180, 30
      %s182 = smul.addr %s181, 4
      %s183 = scalar_lea.vmem %s0, %s182
      %s184 = smul.u32 8, %s19
      %p185 = scmp.lt.s32.totalorder %s18, 1
      %s186 = scalar_select %p185, %s18, 1
      %p187 = scmp.lt.s32.totalorder %s184, 15
      %s188 = scalar_select %p187, %s184, 15
      %s189 = smul.addr %s186, 16
      %s190 = sadd.s32 %s188, %s189
      %s191 = smul.addr %s190, 8
      %s192 = scalar_lea.vmem %s3, %s191
      %s193 = smul.u32 8, %s19
      %s195 = smul.u32 %s19, 4
      %s196 = smul.u32 %s195, 3
      %s197 = smul.addr %s196, 4
      %s198 = scalar_lea.vmem %s183, %s197
      %v199 = vld [vmem:[%s198] sm:$0xf]
      %v200 = vld [vmem:[%s198 + $0x4] sm:$0xf]
      %v201 = vld [vmem:[%s198 + $0x8] sm:$0x1]
      %v202 = vld [vmem:[%s198 + $0xc] sm:$0xf]
      %v203 = vld [vmem:[%s198 + $0x10] sm:$0xf]
      %v204 = vld [vmem:[%s198 + $0x14] sm:$0x1]
      %v205 = vld [vmem:[%s198 + $0x18] sm:$0xf]
      %v206 = vld [vmem:[%s198 + $0x1c] sm:$0xf]
      %v207 = vld [vmem:[%s198 + $0x20] sm:$0x1]
      %v208 = vld [vmem:[%s198 + $0x24] sm:$0xf]
      %v209 = vld [vmem:[%s198 + $0x28] sm:$0xf]
      %v210 = vld [vmem:[%s198 + $0x2c] sm:$0x1]
      %v211 = vld [vmem:[%s198 + $0x30] sm:$0xf]
      %v212 = vld [vmem:[%s198 + $0x34] sm:$0xf]
      %v213 = vld [vmem:[%s198 + $0x38] sm:$0x1]
      %v214 = vld [vmem:[%s198 + $0x3c] sm:$0xf]
      %v215 = vld [vmem:[%s198 + $0x40] sm:$0xf]
      %v216 = vld [vmem:[%s198 + $0x44] sm:$0x1]
      %v217 = vld [vmem:[%s1] sm:$0xf]
      %v218 = vld [vmem:[%s1 + $0x4] sm:$0xf]
      %v219 = vld [vmem:[%s1 + $0x8] sm:$0xf]
      %v220 = vld [vmem:[%s1 + $0xc] sm:$0xf]
      %v221 = vld [vmem:[%s1 + $0x10] sm:$0xf]
      %v222 = vld [vmem:[%s1 + $0x14] sm:$0xf]
      %v223 = vld [vmem:[%s1 + $0x18] sm:$0xf]
      %v224 = vld [vmem:[%s1 + $0x1c] sm:$0xf]
      %v225 = vld [vmem:[%s1 + $0x20] sm:$0xf]
      %vm226 = vsmask.f32 3328
      %vm227 = vsmask.f32 7440
      %vm228 = vmor %vm226, %vm227
      %v230 = vshrl.u32 %v199, 16
      %v232 = vrot.slane %v230, 4
      %v233 = vshll.u32 %v199, 16
      %v235 = vrot.slane %v233, 5
      %v236 = vor.u32 %v232, %v235
      %v237 = vrot.slane %v236, 4
      %v239 = vshll.u32 %v200, 16
      %v241 = vrot.slane %v239, 5
      %v242 = vsel %vm228, %v237, %v241
      %v243 = vshrl.u32 %v200, 16
      %v245 = vrot.slane %v243, 4
      %v246 = vor.u32 %v245, %v241
      %v247 = vrot.slane %v246, 4
      %v249 = vshll.u32 %v201, 16
      %v251 = vrot.slane %v249, 5
      %v252 = vsel %vm228, %v247, %v251
      %v254 = vshrl.u32 %v202, 16
      %v256 = vrot.slane %v254, 4
      %v257 = vshll.u32 %v202, 16
      %v259 = vrot.slane %v257, 5
      %v260 = vor.u32 %v256, %v259
      %v261 = vrot.slane %v260, 4
      %v263 = vshll.u32 %v203, 16
      %v265 = vrot.slane %v263, 5
      %v266 = vsel %vm228, %v261, %v265
      %v267 = vshrl.u32 %v203, 16
      %v269 = vrot.slane %v267, 4
      %v270 = vor.u32 %v269, %v265
      %v271 = vrot.slane %v270, 4
      %v273 = vshll.u32 %v204, 16
      %v275 = vrot.slane %v273, 5
      %v276 = vsel %vm228, %v271, %v275
      %v278 = vshrl.u32 %v205, 16
      %v280 = vrot.slane %v278, 4
      %v281 = vshll.u32 %v205, 16
      %v283 = vrot.slane %v281, 5
      %v284 = vor.u32 %v280, %v283
      %v285 = vrot.slane %v284, 4
      %v287 = vshll.u32 %v206, 16
      %v289 = vrot.slane %v287, 5
      %v290 = vsel %vm228, %v285, %v289
      %v291 = vshrl.u32 %v206, 16
      %v293 = vrot.slane %v291, 4
      %v294 = vor.u32 %v293, %v289
      %v295 = vrot.slane %v294, 4
      %v297 = vshll.u32 %v207, 16
      %v299 = vrot.slane %v297, 5
      %v300 = vsel %vm228, %v295, %v299
      %v302 = vshrl.u32 %v208, 16
      %v304 = vrot.slane %v302, 4
      %v305 = vshll.u32 %v208, 16
      %v307 = vrot.slane %v305, 5
      %v308 = vor.u32 %v304, %v307
      %v309 = vrot.slane %v308, 4
      %v311 = vshll.u32 %v209, 16
      %v313 = vrot.slane %v311, 5
      %v314 = vsel %vm228, %v309, %v313
      %v315 = vshrl.u32 %v209, 16
      %v317 = vrot.slane %v315, 4
      %v318 = vor.u32 %v317, %v313
      %v319 = vrot.slane %v318, 4
      %v321 = vshll.u32 %v210, 16
      %v323 = vrot.slane %v321, 5
      %v324 = vsel %vm228, %v319, %v323
      %s325 = scalar_lea.vmem %s1, 36
      %v326 = vld [vmem:[%s325] sm:$0xf]
      %v327 = vld [vmem:[%s325 + $0x4] sm:$0xf]
      %v328 = vld [vmem:[%s325 + $0x8] sm:$0xf]
      %v329 = vld [vmem:[%s325 + $0xc] sm:$0xf]
      %v330 = vld [vmem:[%s325 + $0x10] sm:$0xf]
      %v331 = vld [vmem:[%s325 + $0x14] sm:$0xf]
      %v332 = vld [vmem:[%s325 + $0x18] sm:$0xf]
      %v333 = vld [vmem:[%s325 + $0x1c] sm:$0xf]
      %v334 = vld [vmem:[%s325 + $0x20] sm:$0xf]
      %v335 = vunpack.c.l.b16 %v242
      %v336 = vunpack.c.l.b16 %v252
      %v337 = vunpack.c.l.b16 %v266
      %v338 = vunpack.c.l.b16 %v276
      %v339 = vunpack.c.l.b16 %v290
      %v340 = vunpack.c.l.b16 %v300
      %v341 = vunpack.c.l.b16 %v314
      %v342 = vunpack.c.l.b16 %v324
      %v343 = vpack.c.b16 %v336, %v335
      %v344 = vpack.c.b16 %v338, %v337
      %v345 = vpack.c.b16 %v340, %v339
      %v346 = vpack.c.b16 %v342, %v341
      %v356 = vunpack.c.l.b16 %v326
      %v357 = vunpack.c.l.b16 %v327
      %v358 = vunpack.c.l.b16 %v328
      %v359 = vunpack.c.l.b16 %v329
      %v360 = vunpack.c.l.b16 %v330
      %v361 = vunpack.c.l.b16 %v331
      %v362 = vunpack.c.l.b16 %v332
      %v363 = vunpack.c.l.b16 %v333
      %v364 = vunpack.c.l.b16 %v334
      %v365 = vpack.c.b16 %v357, %v356
      %v366 = vpack.c.b16 %v359, %v358
      %v367 = vpack.c.b16 %v361, %v360
      %v368 = vpack.c.b16 %v363, %v362
      %v369 = vpack.c.b16 %v364, %v364
      %vm374 = vcmask 588800
      %v376 = vsel %vm374, %v343, 0
      %v379 = vsel %vm374, %v344, 0
      %v382 = vsel %vm374, %v345, 0
      %v385 = vsel %vm374, %v346, 0
      %vm387 = vcmask 1043456
      %v389 = vsel %vm387, %v369, 0
      %391 = vmatprep.subr.bf16.mxu0 0
      %392 = vmatpush1.bf16.msra.mxu0 %v365
      %393 = vmatprep.subr.bf16.mxu0 0
      %394 = vmatpush1.bf16.msra.mxu0 %v366
      %395 = vmatprep.subr.bf16.mxu0 0
      %396 = vmatpush1.bf16.msra.mxu0 %v367
      %397 = vmatprep.subr.bf16.mxu0 0
      %398 = vmatpush1.bf16.msra.mxu0 %v368
      %399 = vmatprep.subr.bf16.mxu0 0
      %400 = vmatpush1.bf16.msra.mxu0 %v389
      %401 = vmatprep.subr.bf16.mxu0 0
      %402 = vmatpush1.bf16.msra.mxu0 0
      %403 = vmatprep.subr.bf16.mxu0 0
      %404 = vmatpush1.bf16.msra.mxu0 0
      %405 = vmatprep.subr.bf16.mxu0 0
      %406 = vmatpush1.bf16.msra.mxu0 0
      %407 = vmatprep.subr.bf16.mxu0 0
      %408 = vmatpush1.bf16.msra.mxu0 0
      %409 = vmatprep.subr.bf16.mxu0 0
      %410 = vmatpush1.bf16.msra.mxu0 0
      %411 = vmatprep.subr.bf16.mxu0 0
      %412 = vmatpush1.bf16.msra.mxu0 0
      %413 = vmatprep.subr.bf16.mxu0 0
      %414 = vmatpush1.bf16.msra.mxu0 0
      %415 = vmatprep.subr.bf16.mxu0 0
      %416 = vmatpush1.bf16.msra.mxu0 0
      %417 = vmatprep.subr.bf16.mxu0 0
      %418 = vmatpush1.bf16.msra.mxu0 0
      %419 = vmatprep.subr.bf16.mxu0 0
      %420 = vmatpush1.bf16.msra.mxu0 0
      %421 = vmatprep.subr.bf16.mxu0 0
      %422 = vmatpush1.bf16.msra.mxu0 0
      %423 = vmatprep.mubr.bf16.mxu0 0
      %424 = vmatmul.mubr.bf16.gmra.mrb[0].mxu0 %v376
      %v425 = vpop.f32.mrb[0].mxu0
      %v426 = vadd.f32 0.0, %v425
      %v427 = vpop.f32.mrb[0].mxu0
      %v428 = vpop.f32.mrb[0].mxu0
      %v429 = vadd.f32 0.0, %v428
      %v430 = vpop.f32.mrb[0].mxu0
      %431 = vmatprep.mubr.bf16.mxu0 0
      %432 = vmatmul.mubr.bf16.gmra.mrb[0].mxu0 %v379
      %v433 = vpop.f32.mrb[0].mxu0
      %v434 = vadd.f32 0.0, %v433
      %v435 = vpop.f32.mrb[0].mxu0
      %v436 = vpop.f32.mrb[0].mxu0
      %v437 = vadd.f32 0.0, %v436
      %v438 = vpop.f32.mrb[0].mxu0
      %439 = vmatprep.mubr.bf16.mxu0 0
      %440 = vmatmul.mubr.bf16.gmra.mrb[0].mxu0 %v382
      %v441 = vpop.f32.mrb[0].mxu0
      %v442 = vadd.f32 0.0, %v441
      %v443 = vpop.f32.mrb[0].mxu0
      %v444 = vpop.f32.mrb[0].mxu0
      %v445 = vadd.f32 0.0, %v444
      %v446 = vpop.f32.mrb[0].mxu0
      %447 = vmatprep.mubr.bf16.mxu0 0
      %448 = vmatmul.mubr.bf16.gmra.mrb[0].mxu0 %v385
      %v449 = vpop.f32.mrb[0].mxu0
      %v450 = vadd.f32 0.0, %v449
      %v451 = vpop.f32.mrb[0].mxu0
      %v452 = vpop.f32.mrb[0].mxu0
      %v453 = vadd.f32 0.0, %v452
      %v454 = vpop.f32.mrb[0].mxu0
      %455 = vdwg.mxu0
      %v464 = vunpack.c.l.b16 %v199
      %v465 = vunpack.c.l.b16 %v200
      %v466 = vunpack.c.l.b16 %v202
      %v467 = vunpack.c.l.b16 %v203
      %v468 = vunpack.c.l.b16 %v205
      %v469 = vunpack.c.l.b16 %v206
      %v470 = vunpack.c.l.b16 %v208
      %v471 = vunpack.c.l.b16 %v209
      %v472 = vpack.c.b16 %v465, %v464
      %v473 = vpack.c.b16 %v467, %v466
      %v474 = vpack.c.b16 %v469, %v468
      %v475 = vpack.c.b16 %v471, %v470
      %v485 = vunpack.c.l.b16 %v217
      %v486 = vunpack.c.l.b16 %v218
      %v487 = vunpack.c.l.b16 %v219
      %v488 = vunpack.c.l.b16 %v220
      %v489 = vunpack.c.l.b16 %v221
      %v490 = vunpack.c.l.b16 %v222
      %v491 = vunpack.c.l.b16 %v223
      %v492 = vunpack.c.l.b16 %v224
      %v493 = vunpack.c.l.b16 %v225
      %v494 = vpack.c.b16 %v486, %v485
      %v495 = vpack.c.b16 %v488, %v487
      %v496 = vpack.c.b16 %v490, %v489
      %v497 = vpack.c.b16 %v492, %v491
      %v498 = vpack.c.b16 %v493, %v493
      %v504 = vsel %vm374, %v472, 0
      %v507 = vsel %vm374, %v473, 0
      %v510 = vsel %vm374, %v474, 0
      %v513 = vsel %vm374, %v475, 0
      %v516 = vsel %vm387, %v498, 0
      %518 = vmatprep.subr.bf16.mxu0 0
      %519 = vmatpush1.bf16.msra.mxu0 %v494
      %520 = vmatprep.subr.bf16.mxu0 0
      %521 = vmatpush1.bf16.msra.mxu0 %v495
      %522 = vmatprep.subr.bf16.mxu0 0
      %523 = vmatpush1.bf16.msra.mxu0 %v496
      %524 = vmatprep.subr.bf16.mxu0 0
      %525 = vmatpush1.bf16.msra.mxu0 %v497
      %526 = vmatprep.subr.bf16.mxu0 0
      %527 = vmatpush1.bf16.msra.mxu0 %v516
      %528 = vmatprep.subr.bf16.mxu0 0
      %529 = vmatpush1.bf16.msra.mxu0 0
      %530 = vmatprep.subr.bf16.mxu0 0
      %531 = vmatpush1.bf16.msra.mxu0 0
      %532 = vmatprep.subr.bf16.mxu0 0
      %533 = vmatpush1.bf16.msra.mxu0 0
      %534 = vmatprep.subr.bf16.mxu0 0
      %535 = vmatpush1.bf16.msra.mxu0 0
      %536 = vmatprep.subr.bf16.mxu0 0
      %537 = vmatpush1.bf16.msra.mxu0 0
      %538 = vmatprep.subr.bf16.mxu0 0
      %539 = vmatpush1.bf16.msra.mxu0 0
      %540 = vmatprep.subr.bf16.mxu0 0
      %541 = vmatpush1.bf16.msra.mxu0 0
      %542 = vmatprep.subr.bf16.mxu0 0
      %543 = vmatpush1.bf16.msra.mxu0 0
      %544 = vmatprep.subr.bf16.mxu0 0
      %545 = vmatpush1.bf16.msra.mxu0 0
      %546 = vmatprep.subr.bf16.mxu0 0
      %547 = vmatpush1.bf16.msra.mxu0 0
      %548 = vmatprep.subr.bf16.mxu0 0
      %549 = vmatpush1.bf16.msra.mxu0 0
      %550 = vmatprep.mubr.bf16.mxu0 0
      %551 = vmatmul.mubr.bf16.gmra.mrb[0].mxu0 %v504
      %v552 = vpop.f32.mrb[0].mxu0
      %v553 = vadd.f32 %v426, %v552
      %v554 = vpop.f32.mrb[0].mxu0
      %v555 = vpop.f32.mrb[0].mxu0
      %v556 = vadd.f32 %v429, %v555
      %v557 = vpop.f32.mrb[0].mxu0
      %558 = vmatprep.mubr.bf16.mxu0 0
      %559 = vmatmul.mubr.bf16.gmra.mrb[0].mxu0 %v507
      %v560 = vpop.f32.mrb[0].mxu0
      %v561 = vadd.f32 %v434, %v560
      %v562 = vpop.f32.mrb[0].mxu0
      %v563 = vpop.f32.mrb[0].mxu0
      %v564 = vadd.f32 %v437, %v563
      %v565 = vpop.f32.mrb[0].mxu0
      %566 = vmatprep.mubr.bf16.mxu0 0
      %567 = vmatmul.mubr.bf16.gmra.mrb[0].mxu0 %v510
      %v568 = vpop.f32.mrb[0].mxu0
      %v569 = vadd.f32 %v442, %v568
      %v570 = vpop.f32.mrb[0].mxu0
      %v571 = vpop.f32.mrb[0].mxu0
      %v572 = vadd.f32 %v445, %v571
      %v573 = vpop.f32.mrb[0].mxu0
      %574 = vmatprep.mubr.bf16.mxu0 0
      %575 = vmatmul.mubr.bf16.gmra.mrb[0].mxu0 %v513
      %v576 = vpop.f32.mrb[0].mxu0
      %v577 = vadd.f32 %v450, %v576
      %v578 = vpop.f32.mrb[0].mxu0
      %v579 = vpop.f32.mrb[0].mxu0
      %v580 = vadd.f32 %v453, %v579
      %v581 = vpop.f32.mrb[0].mxu0
      %582 = vdwg.mxu0
      %vm587 = vcmask 1042432
      %vm588 = vcmask 1046532
      %vm589 = vmor %vm587, %vm588
      %v590 = vrot.slane %v199, 5
      %v591 = vrot.slane %v590, 4
      %v592 = vrot.slane %v200, 5
      %v593 = vsel %vm589, %v591, %v592
      %v594 = vrot.slane %v592, 4
      %v595 = vrot.slane %v201, 5
      %v596 = vsel %vm589, %v594, %v595
      %v597 = vrot.slane %v202, 5
      %v598 = vrot.slane %v597, 4
      %v599 = vrot.slane %v203, 5
      %v600 = vsel %vm589, %v598, %v599
      %v601 = vrot.slane %v599, 4
      %v602 = vrot.slane %v204, 5
      %v603 = vsel %vm589, %v601, %v602
      %v604 = vrot.slane %v205, 5
      %v605 = vrot.slane %v604, 4
      %v606 = vrot.slane %v206, 5
      %v607 = vsel %vm589, %v605, %v606
      %v608 = vrot.slane %v606, 4
      %v609 = vrot.slane %v207, 5
      %v610 = vsel %vm589, %v608, %v609
      %v611 = vrot.slane %v208, 5
      %v612 = vrot.slane %v611, 4
      %v613 = vrot.slane %v209, 5
      %v614 = vsel %vm589, %v612, %v613
      %v615 = vrot.slane %v613, 4
      %v616 = vrot.slane %v210, 5
      %v617 = vsel %vm589, %v615, %v616
      %s618 = scalar_lea.vmem %s1, 72
      %v619 = vld [vmem:[%s618] sm:$0xf]
      %v620 = vld [vmem:[%s618 + $0x4] sm:$0xf]
      %v621 = vld [vmem:[%s618 + $0x8] sm:$0xf]
      %v622 = vld [vmem:[%s618 + $0xc] sm:$0xf]
      %v623 = vld [vmem:[%s618 + $0x10] sm:$0xf]
      %v624 = vld [vmem:[%s618 + $0x14] sm:$0xf]
      %v625 = vld [vmem:[%s618 + $0x18] sm:$0xf]
      %v626 = vld [vmem:[%s618 + $0x1c] sm:$0xf]
      %v627 = vld [vmem:[%s618 + $0x20] sm:$0xf]
      %v628 = vunpack.c.l.b16 %v593
      %v629 = vunpack.c.l.b16 %v596
      %v630 = vunpack.c.l.b16 %v600
      %v631 = vunpack.c.l.b16 %v603
      %v632 = vunpack.c.l.b16 %v607
      %v633 = vunpack.c.l.b16 %v610
      %v634 = vunpack.c.l.b16 %v614
      %v635 = vunpack.c.l.b16 %v617
      %v636 = vpack.c.b16 %v629, %v628
      %v637 = vpack.c.b16 %v631, %v630
      %v638 = vpack.c.b16 %v633, %v632
      %v639 = vpack.c.b16 %v635, %v634
      %v649 = vunpack.c.l.b16 %v619
      %v650 = vunpack.c.l.b16 %v620
      %v651 = vunpack.c.l.b16 %v621
      %v652 = vunpack.c.l.b16 %v622
      %v653 = vunpack.c.l.b16 %v623
      %v654 = vunpack.c.l.b16 %v624
      %v655 = vunpack.c.l.b16 %v625
      %v656 = vunpack.c.l.b16 %v626
      %v657 = vunpack.c.l.b16 %v627
      %v658 = vpack.c.b16 %v650, %v649
      %v659 = vpack.c.b16 %v652, %v651
      %v660 = vpack.c.b16 %v654, %v653
      %v661 = vpack.c.b16 %v656, %v655
      %v662 = vpack.c.b16 %v657, %v657
      %v668 = vsel %vm374, %v636, 0
      %v671 = vsel %vm374, %v637, 0
      %v674 = vsel %vm374, %v638, 0
      %v677 = vsel %vm374, %v639, 0
      %v680 = vsel %vm387, %v662, 0
      %682 = vmatprep.subr.bf16.mxu0 0
      %683 = vmatpush1.bf16.msra.mxu0 %v658
      %684 = vmatprep.subr.bf16.mxu0 0
      %685 = vmatpush1.bf16.msra.mxu0 %v659
      %686 = vmatprep.subr.bf16.mxu0 0
      %687 = vmatpush1.bf16.msra.mxu0 %v660
      %688 = vmatprep.subr.bf16.mxu0 0
      %689 = vmatpush1.bf16.msra.mxu0 %v661
      %690 = vmatprep.subr.bf16.mxu0 0
      %691 = vmatpush1.bf16.msra.mxu0 %v680
      %692 = vmatprep.subr.bf16.mxu0 0
      %693 = vmatpush1.bf16.msra.mxu0 0
      %694 = vmatprep.subr.bf16.mxu0 0
      %695 = vmatpush1.bf16.msra.mxu0 0
      %696 = vmatprep.subr.bf16.mxu0 0
      %697 = vmatpush1.bf16.msra.mxu0 0
      %698 = vmatprep.subr.bf16.mxu0 0
      %699 = vmatpush1.bf16.msra.mxu0 0
      %700 = vmatprep.subr.bf16.mxu0 0
      %701 = vmatpush1.bf16.msra.mxu0 0
      %702 = vmatprep.subr.bf16.mxu0 0
      %703 = vmatpush1.bf16.msra.mxu0 0
      %704 = vmatprep.subr.bf16.mxu0 0
      %705 = vmatpush1.bf16.msra.mxu0 0
      %706 = vmatprep.subr.bf16.mxu0 0
      %707 = vmatpush1.bf16.msra.mxu0 0
      %708 = vmatprep.subr.bf16.mxu0 0
      %709 = vmatpush1.bf16.msra.mxu0 0
      %710 = vmatprep.subr.bf16.mxu0 0
      %711 = vmatpush1.bf16.msra.mxu0 0
      %712 = vmatprep.subr.bf16.mxu0 0
      %713 = vmatpush1.bf16.msra.mxu0 0
      %714 = vmatprep.mubr.bf16.mxu0 0
      %715 = vmatmul.mubr.bf16.gmra.mrb[0].mxu0 %v668
      %v716 = vpop.f32.mrb[0].mxu0
      %v717 = vadd.f32 0.0, %v716
      %v718 = vpop.f32.mrb[0].mxu0
      %v719 = vpop.f32.mrb[0].mxu0
      %v720 = vadd.f32 0.0, %v719
      %v721 = vpop.f32.mrb[0].mxu0
      %722 = vmatprep.mubr.bf16.mxu0 0
      %723 = vmatmul.mubr.bf16.gmra.mrb[0].mxu0 %v671
      %v724 = vpop.f32.mrb[0].mxu0
      %v725 = vadd.f32 0.0, %v724
      %v726 = vpop.f32.mrb[0].mxu0
      %v727 = vpop.f32.mrb[0].mxu0
      %v728 = vadd.f32 0.0, %v727
      %v729 = vpop.f32.mrb[0].mxu0
      %730 = vmatprep.mubr.bf16.mxu0 0
      %731 = vmatmul.mubr.bf16.gmra.mrb[0].mxu0 %v674
      %v732 = vpop.f32.mrb[0].mxu0
      %v733 = vadd.f32 0.0, %v732
      %v734 = vpop.f32.mrb[0].mxu0
      %v735 = vpop.f32.mrb[0].mxu0
      %v736 = vadd.f32 0.0, %v735
      %v737 = vpop.f32.mrb[0].mxu0
      %738 = vmatprep.mubr.bf16.mxu0 0
      %739 = vmatmul.mubr.bf16.gmra.mrb[0].mxu0 %v677
      %v740 = vpop.f32.mrb[0].mxu0
      %v741 = vadd.f32 0.0, %v740
      %v742 = vpop.f32.mrb[0].mxu0
      %v743 = vpop.f32.mrb[0].mxu0
      %v744 = vadd.f32 0.0, %v743
      %v745 = vpop.f32.mrb[0].mxu0
      %746 = vdwg.mxu0
      %v747 = vadd.f32 %v553, %v717
      %v748 = vadd.f32 %v556, %v720
      %v749 = vadd.f32 %v561, %v725
      %v750 = vadd.f32 %v564, %v728
      %v751 = vadd.f32 %v569, %v733
      %v752 = vadd.f32 %v572, %v736
      %v753 = vadd.f32 %v577, %v741
      %v754 = vadd.f32 %v580, %v744
      %s755 = scalar_lea.vmem %s1, 108
      %v756 = vld [vmem:[%s755] sm:$0xf]
      %v757 = vld [vmem:[%s755 + $0x4] sm:$0xf]
      %v758 = vld [vmem:[%s755 + $0x8] sm:$0xf]
      %v759 = vld [vmem:[%s755 + $0xc] sm:$0xf]
      %v760 = vld [vmem:[%s755 + $0x10] sm:$0xf]
      %v761 = vld [vmem:[%s755 + $0x14] sm:$0xf]
      %v762 = vld [vmem:[%s755 + $0x18] sm:$0xf]
      %v763 = vld [vmem:[%s755 + $0x1c] sm:$0xf]
      %v764 = vld [vmem:[%s755 + $0x20] sm:$0xf]
      %v767 = vunpack.c.l.b16 %v211
      %v768 = vunpack.c.l.b16 %v212
      %v769 = vpack.c.b16 %v768, %v767
      %v779 = vunpack.c.l.b16 %v756
      %v780 = vunpack.c.l.b16 %v757
      %v781 = vunpack.c.l.b16 %v758
      %v782 = vunpack.c.l.b16 %v759
      %v783 = vunpack.c.l.b16 %v760
      %v784 = vunpack.c.l.b16 %v761
      %v785 = vunpack.c.l.b16 %v762
      %v786 = vunpack.c.l.b16 %v763
      %v787 = vunpack.c.l.b16 %v764
      %v788 = vpack.c.b16 %v780, %v779
      %v789 = vpack.c.b16 %v782, %v781
      %v790 = vpack.c.b16 %v784, %v783
      %v791 = vpack.c.b16 %v786, %v785
      %v792 = vpack.c.b16 %v787, %v787
      %v798 = vsel %vm374, %v769, 0
      %v801 = vsel %vm387, %v792, 0
      %803 = vmatprep.subr.bf16.mxu0 0
      %804 = vmatpush1.bf16.msra.mxu0 %v788
      %805 = vmatprep.subr.bf16.mxu0 0
      %806 = vmatpush1.bf16.msra.mxu0 %v789
      %807 = vmatprep.subr.bf16.mxu0 0
      %808 = vmatpush1.bf16.msra.mxu0 %v790
      %809 = vmatprep.subr.bf16.mxu0 0
      %810 = vmatpush1.bf16.msra.mxu0 %v791
      %811 = vmatprep.subr.bf16.mxu0 0
      %812 = vmatpush1.bf16.msra.mxu0 %v801
      %813 = vmatprep.subr.bf16.mxu0 0
      %814 = vmatpush1.bf16.msra.mxu0 0
      %815 = vmatprep.subr.bf16.mxu0 0
      %816 = vmatpush1.bf16.msra.mxu0 0
      %817 = vmatprep.subr.bf16.mxu0 0
      %818 = vmatpush1.bf16.msra.mxu0 0
      %819 = vmatprep.subr.bf16.mxu0 0
      %820 = vmatpush1.bf16.msra.mxu0 0
      %821 = vmatprep.subr.bf16.mxu0 0
      %822 = vmatpush1.bf16.msra.mxu0 0
      %823 = vmatprep.subr.bf16.mxu0 0
      %824 = vmatpush1.bf16.msra.mxu0 0
      %825 = vmatprep.subr.bf16.mxu0 0
      %826 = vmatpush1.bf16.msra.mxu0 0
      %827 = vmatprep.subr.bf16.mxu0 0
      %828 = vmatpush1.bf16.msra.mxu0 0
      %829 = vmatprep.subr.bf16.mxu0 0
      %830 = vmatpush1.bf16.msra.mxu0 0
      %831 = vmatprep.subr.bf16.mxu0 0
      %832 = vmatpush1.bf16.msra.mxu0 0
      %833 = vmatprep.subr.bf16.mxu0 0
      %834 = vmatpush1.bf16.msra.mxu0 0
      %835 = vmatprep.mubr.bf16.mxu0 0
      %836 = vmatmul.mubr.bf16.gmra.mrb[0].mxu0 %v507
      %v837 = vpop.f32.mrb[0].mxu0
      %v838 = vadd.f32 0.0, %v837
      %v839 = vpop.f32.mrb[0].mxu0
      %v840 = vpop.f32.mrb[0].mxu0
      %v841 = vadd.f32 0.0, %v840
      %v842 = vpop.f32.mrb[0].mxu0
      %843 = vmatprep.mubr.bf16.mxu0 0
      %844 = vmatmul.mubr.bf16.gmra.mrb[0].mxu0 %v510
      %v845 = vpop.f32.mrb[0].mxu0
      %v846 = vadd.f32 0.0, %v845
      %v847 = vpop.f32.mrb[0].mxu0
      %v848 = vpop.f32.mrb[0].mxu0
      %v849 = vadd.f32 0.0, %v848
      %v850 = vpop.f32.mrb[0].mxu0
      %851 = vmatprep.mubr.bf16.mxu0 0
      %852 = vmatmul.mubr.bf16.gmra.mrb[0].mxu0 %v513
      %v853 = vpop.f32.mrb[0].mxu0
      %v854 = vadd.f32 0.0, %v853
      %v855 = vpop.f32.mrb[0].mxu0
      %v856 = vpop.f32.mrb[0].mxu0
      %v857 = vadd.f32 0.0, %v856
      %v858 = vpop.f32.mrb[0].mxu0
      %859 = vmatprep.mubr.bf16.mxu0 0
      %860 = vmatmul.mubr.bf16.gmra.mrb[0].mxu0 %v798
      %v861 = vpop.f32.mrb[0].mxu0
      %v862 = vadd.f32 0.0, %v861
      %v863 = vpop.f32.mrb[0].mxu0
      %v864 = vpop.f32.mrb[0].mxu0
      %v865 = vadd.f32 0.0, %v864
      %v866 = vpop.f32.mrb[0].mxu0
      %867 = vdwg.mxu0
      %v868 = vadd.f32 %v747, %v838
      %v869 = vadd.f32 %v748, %v841
      %v870 = vadd.f32 %v749, %v846
      %v871 = vadd.f32 %v750, %v849
      %v872 = vadd.f32 %v751, %v854
      %v873 = vadd.f32 %v752, %v857
      %v874 = vadd.f32 %v753, %v862
      %v875 = vadd.f32 %v754, %v865
      %v877 = vshrl.u32 %v211, 16
      %v879 = vrot.slane %v877, 4
      %v880 = vshll.u32 %v211, 16
      %v882 = vrot.slane %v880, 5
      %v883 = vor.u32 %v879, %v882
      %v884 = vrot.slane %v883, 4
      %v886 = vshll.u32 %v212, 16
      %v888 = vrot.slane %v886, 5
      %v889 = vsel %vm228, %v884, %v888
      %v890 = vshrl.u32 %v212, 16
      %v892 = vrot.slane %v890, 4
      %v893 = vor.u32 %v892, %v888
      %v894 = vrot.slane %v893, 4
      %v896 = vshll.u32 %v213, 16
      %v898 = vrot.slane %v896, 5
      %v899 = vsel %vm228, %v894, %v898
      %s900 = scalar_lea.vmem %s1, 144
      %v901 = vld [vmem:[%s900] sm:$0xf]
      %v902 = vld [vmem:[%s900 + $0x4] sm:$0xf]
      %v903 = vld [vmem:[%s900 + $0x8] sm:$0xf]
      %v904 = vld [vmem:[%s900 + $0xc] sm:$0xf]
      %v905 = vld [vmem:[%s900 + $0x10] sm:$0xf]
      %v906 = vld [vmem:[%s900 + $0x14] sm:$0xf]
      %v907 = vld [vmem:[%s900 + $0x18] sm:$0xf]
      %v908 = vld [vmem:[%s900 + $0x1c] sm:$0xf]
      %v909 = vld [vmem:[%s900 + $0x20] sm:$0xf]
      %v910 = vunpack.c.l.b16 %v889
      %v911 = vunpack.c.l.b16 %v899
      %v912 = vpack.c.b16 %v911, %v910
      %v922 = vunpack.c.l.b16 %v901
      %v923 = vunpack.c.l.b16 %v902
      %v924 = vunpack.c.l.b16 %v903
      %v925 = vunpack.c.l.b16 %v904
      %v926 = vunpack.c.l.b16 %v905
      %v927 = vunpack.c.l.b16 %v906
      %v928 = vunpack.c.l.b16 %v907
      %v929 = vunpack.c.l.b16 %v908
      %v930 = vunpack.c.l.b16 %v909
      %v931 = vpack.c.b16 %v923, %v922
      %v932 = vpack.c.b16 %v925, %v924
      %v933 = vpack.c.b16 %v927, %v926
      %v934 = vpack.c.b16 %v929, %v928
      %v935 = vpack.c.b16 %v930, %v930
      %v941 = vsel %vm374, %v912, 0
      %v944 = vsel %vm387, %v935, 0
      %946 = vmatprep.subr.bf16.mxu0 0
      %947 = vmatpush1.bf16.msra.mxu0 %v931
      %948 = vmatprep.subr.bf16.mxu0 0
      %949 = vmatpush1.bf16.msra.mxu0 %v932
      %950 = vmatprep.subr.bf16.mxu0 0
      %951 = vmatpush1.bf16.msra.mxu0 %v933
      %952 = vmatprep.subr.bf16.mxu0 0
      %953 = vmatpush1.bf16.msra.mxu0 %v934
      %954 = vmatprep.subr.bf16.mxu0 0
      %955 = vmatpush1.bf16.msra.mxu0 %v944
      %956 = vmatprep.subr.bf16.mxu0 0
      %957 = vmatpush1.bf16.msra.mxu0 0
      %958 = vmatprep.subr.bf16.mxu0 0
      %959 = vmatpush1.bf16.msra.mxu0 0
      %960 = vmatprep.subr.bf16.mxu0 0
      %961 = vmatpush1.bf16.msra.mxu0 0
      %962 = vmatprep.subr.bf16.mxu0 0
      %963 = vmatpush1.bf16.msra.mxu0 0
      %964 = vmatprep.subr.bf16.mxu0 0
      %965 = vmatpush1.bf16.msra.mxu0 0
      %966 = vmatprep.subr.bf16.mxu0 0
      %967 = vmatpush1.bf16.msra.mxu0 0
      %968 = vmatprep.subr.bf16.mxu0 0
      %969 = vmatpush1.bf16.msra.mxu0 0
      %970 = vmatprep.subr.bf16.mxu0 0
      %971 = vmatpush1.bf16.msra.mxu0 0
      %972 = vmatprep.subr.bf16.mxu0 0
      %973 = vmatpush1.bf16.msra.mxu0 0
      %974 = vmatprep.subr.bf16.mxu0 0
      %975 = vmatpush1.bf16.msra.mxu0 0
      %976 = vmatprep.subr.bf16.mxu0 0
      %977 = vmatpush1.bf16.msra.mxu0 0
      %978 = vmatprep.mubr.bf16.mxu0 0
      %979 = vmatmul.mubr.bf16.gmra.mrb[0].mxu0 %v379
      %v980 = vpop.f32.mrb[0].mxu0
      %v981 = vadd.f32 0.0, %v980
      %v982 = vpop.f32.mrb[0].mxu0
      %v983 = vpop.f32.mrb[0].mxu0
      %v984 = vadd.f32 0.0, %v983
      %v985 = vpop.f32.mrb[0].mxu0
      %986 = vmatprep.mubr.bf16.mxu0 0
      %987 = vmatmul.mubr.bf16.gmra.mrb[0].mxu0 %v382
      %v988 = vpop.f32.mrb[0].mxu0
      %v989 = vadd.f32 0.0, %v988
      %v990 = vpop.f32.mrb[0].mxu0
      %v991 = vpop.f32.mrb[0].mxu0
      %v992 = vadd.f32 0.0, %v991
      %v993 = vpop.f32.mrb[0].mxu0
      %994 = vmatprep.mubr.bf16.mxu0 0
      %995 = vmatmul.mubr.bf16.gmra.mrb[0].mxu0 %v385
      %v996 = vpop.f32.mrb[0].mxu0
      %v997 = vadd.f32 0.0, %v996
      %v998 = vpop.f32.mrb[0].mxu0
      %v999 = vpop.f32.mrb[0].mxu0
      %v1000 = vadd.f32 0.0, %v999
      %v1001 = vpop.f32.mrb[0].mxu0
      %1002 = vmatprep.mubr.bf16.mxu0 0
      %1003 = vmatmul.mubr.bf16.gmra.mrb[0].mxu0 %v941
      %v1004 = vpop.f32.mrb[0].mxu0
      %v1005 = vadd.f32 0.0, %v1004
      %v1006 = vpop.f32.mrb[0].mxu0
      %v1007 = vpop.f32.mrb[0].mxu0
      %v1008 = vadd.f32 0.0, %v1007
      %v1009 = vpop.f32.mrb[0].mxu0
      %1010 = vdwg.mxu0
      %v1011 = vadd.f32 %v868, %v981
      %v1012 = vadd.f32 %v869, %v984
      %v1013 = vadd.f32 %v870, %v989
      %v1014 = vadd.f32 %v871, %v992
      %v1015 = vadd.f32 %v872, %v997
      %v1016 = vadd.f32 %v873, %v1000
      %v1017 = vadd.f32 %v874, %v1005
      %v1018 = vadd.f32 %v875, %v1008
      %v1020 = vrot.slane %v211, 5
      %v1021 = vrot.slane %v1020, 4
      %v1022 = vrot.slane %v212, 5
      %v1023 = vsel %vm589, %v1021, %v1022
      %v1024 = vrot.slane %v1022, 4
      %v1025 = vrot.slane %v213, 5
      %v1026 = vsel %vm589, %v1024, %v1025
      %s1027 = scalar_lea.vmem %s1, 180
      %v1028 = vld [vmem:[%s1027] sm:$0xf]
      %v1029 = vld [vmem:[%s1027 + $0x4] sm:$0xf]
      %v1030 = vld [vmem:[%s1027 + $0x8] sm:$0xf]
      %v1031 = vld [vmem:[%s1027 + $0xc] sm:$0xf]
      %v1032 = vld [vmem:[%s1027 + $0x10] sm:$0xf]
      %v1033 = vld [vmem:[%s1027 + $0x14] sm:$0xf]
      %v1034 = vld [vmem:[%s1027 + $0x18] sm:$0xf]
      %v1035 = vld [vmem:[%s1027 + $0x1c] sm:$0xf]
      %v1036 = vld [vmem:[%s1027 + $0x20] sm:$0xf]
      %v1037 = vunpack.c.l.b16 %v1023
      %v1038 = vunpack.c.l.b16 %v1026
      %v1039 = vpack.c.b16 %v1038, %v1037
      %v1049 = vunpack.c.l.b16 %v1028
      %v1050 = vunpack.c.l.b16 %v1029
      %v1051 = vunpack.c.l.b16 %v1030
      %v1052 = vunpack.c.l.b16 %v1031
      %v1053 = vunpack.c.l.b16 %v1032
      %v1054 = vunpack.c.l.b16 %v1033
      %v1055 = vunpack.c.l.b16 %v1034
      %v1056 = vunpack.c.l.b16 %v1035
      %v1057 = vunpack.c.l.b16 %v1036
      %v1058 = vpack.c.b16 %v1050, %v1049
      %v1059 = vpack.c.b16 %v1052, %v1051
      %v1060 = vpack.c.b16 %v1054, %v1053
      %v1061 = vpack.c.b16 %v1056, %v1055
      %v1062 = vpack.c.b16 %v1057, %v1057
      %v1068 = vsel %vm374, %v1039, 0
      %v1071 = vsel %vm387, %v1062, 0
      %1073 = vmatprep.subr.bf16.mxu0 0
      %1074 = vmatpush1.bf16.msra.mxu0 %v1058
      %1075 = vmatprep.subr.bf16.mxu0 0
      %1076 = vmatpush1.bf16.msra.mxu0 %v1059
      %1077 = vmatprep.subr.bf16.mxu0 0
      %1078 = vmatpush1.bf16.msra.mxu0 %v1060
      %1079 = vmatprep.subr.bf16.mxu0 0
      %1080 = vmatpush1.bf16.msra.mxu0 %v1061
      %1081 = vmatprep.subr.bf16.mxu0 0
      %1082 = vmatpush1.bf16.msra.mxu0 %v1071
      %1083 = vmatprep.subr.bf16.mxu0 0
      %1084 = vmatpush1.bf16.msra.mxu0 0
      %1085 = vmatprep.subr.bf16.mxu0 0
      %1086 = vmatpush1.bf16.msra.mxu0 0
      %1087 = vmatprep.subr.bf16.mxu0 0
      %1088 = vmatpush1.bf16.msra.mxu0 0
      %1089 = vmatprep.subr.bf16.mxu0 0
      %1090 = vmatpush1.bf16.msra.mxu0 0
      %1091 = vmatprep.subr.bf16.mxu0 0
      %1092 = vmatpush1.bf16.msra.mxu0 0
      %1093 = vmatprep.subr.bf16.mxu0 0
      %1094 = vmatpush1.bf16.msra.mxu0 0
      %1095 = vmatprep.subr.bf16.mxu0 0
      %1096 = vmatpush1.bf16.msra.mxu0 0
      %1097 = vmatprep.subr.bf16.mxu0 0
      %1098 = vmatpush1.bf16.msra.mxu0 0
      %1099 = vmatprep.subr.bf16.mxu0 0
      %1100 = vmatpush1.bf16.msra.mxu0 0
      %1101 = vmatprep.subr.bf16.mxu0 0
      %1102 = vmatpush1.bf16.msra.mxu0 0
      %1103 = vmatprep.subr.bf16.mxu0 0
      %1104 = vmatpush1.bf16.msra.mxu0 0
      %1105 = vmatprep.mubr.bf16.mxu0 0
      %1106 = vmatmul.mubr.bf16.gmra.mrb[0].mxu0 %v671
      %v1107 = vpop.f32.mrb[0].mxu0
      %v1108 = vadd.f32 0.0, %v1107
      %v1109 = vpop.f32.mrb[0].mxu0
      %v1110 = vpop.f32.mrb[0].mxu0
      %v1111 = vadd.f32 0.0, %v1110
      %v1112 = vpop.f32.mrb[0].mxu0
      %1113 = vmatprep.mubr.bf16.mxu0 0
      %1114 = vmatmul.mubr.bf16.gmra.mrb[0].mxu0 %v674
      %v1115 = vpop.f32.mrb[0].mxu0
      %v1116 = vadd.f32 0.0, %v1115
      %v1117 = vpop.f32.mrb[0].mxu0
      %v1118 = vpop.f32.mrb[0].mxu0
      %v1119 = vadd.f32 0.0, %v1118
      %v1120 = vpop.f32.mrb[0].mxu0
      %1121 = vmatprep.mubr.bf16.mxu0 0
      %1122 = vmatmul.mubr.bf16.gmra.mrb[0].mxu0 %v677
      %v1123 = vpop.f32.mrb[0].mxu0
      %v1124 = vadd.f32 0.0, %v1123
      %v1125 = vpop.f32.mrb[0].mxu0
      %v1126 = vpop.f32.mrb[0].mxu0
      %v1127 = vadd.f32 0.0, %v1126
      %v1128 = vpop.f32.mrb[0].mxu0
      %1129 = vmatprep.mubr.bf16.mxu0 0
      %1130 = vmatmul.mubr.bf16.gmra.mrb[0].mxu0 %v1068
      %v1131 = vpop.f32.mrb[0].mxu0
      %v1132 = vadd.f32 0.0, %v1131
      %v1133 = vpop.f32.mrb[0].mxu0
      %v1134 = vpop.f32.mrb[0].mxu0
      %v1135 = vadd.f32 0.0, %v1134
      %v1136 = vpop.f32.mrb[0].mxu0
      %1137 = vdwg.mxu0
      %v1138 = vadd.f32 %v1011, %v1108
      %v1139 = vadd.f32 %v1012, %v1111
      %v1140 = vadd.f32 %v1013, %v1116
      %v1141 = vadd.f32 %v1014, %v1119
      %v1142 = vadd.f32 %v1015, %v1124
      %v1143 = vadd.f32 %v1016, %v1127
      %v1144 = vadd.f32 %v1017, %v1132
      %v1145 = vadd.f32 %v1018, %v1135
      %s1146 = scalar_lea.vmem %s1, 216
      %v1147 = vld [vmem:[%s1146] sm:$0xf]
      %v1148 = vld [vmem:[%s1146 + $0x4] sm:$0xf]
      %v1149 = vld [vmem:[%s1146 + $0x8] sm:$0xf]
      %v1150 = vld [vmem:[%s1146 + $0xc] sm:$0xf]
      %v1151 = vld [vmem:[%s1146 + $0x10] sm:$0xf]
      %v1152 = vld [vmem:[%s1146 + $0x14] sm:$0xf]
      %v1153 = vld [vmem:[%s1146 + $0x18] sm:$0xf]
      %v1154 = vld [vmem:[%s1146 + $0x1c] sm:$0xf]
      %v1155 = vld [vmem:[%s1146 + $0x20] sm:$0xf]
      %v1158 = vunpack.c.l.b16 %v214
      %v1159 = vunpack.c.l.b16 %v215
      %v1160 = vpack.c.b16 %v1159, %v1158
      %v1170 = vunpack.c.l.b16 %v1147
      %v1171 = vunpack.c.l.b16 %v1148
      %v1172 = vunpack.c.l.b16 %v1149
      %v1173 = vunpack.c.l.b16 %v1150
      %v1174 = vunpack.c.l.b16 %v1151
      %v1175 = vunpack.c.l.b16 %v1152
      %v1176 = vunpack.c.l.b16 %v1153
      %v1177 = vunpack.c.l.b16 %v1154
      %v1178 = vunpack.c.l.b16 %v1155
      %v1179 = vpack.c.b16 %v1171, %v1170
      %v1180 = vpack.c.b16 %v1173, %v1172
      %v1181 = vpack.c.b16 %v1175, %v1174
      %v1182 = vpack.c.b16 %v1177, %v1176
      %v1183 = vpack.c.b16 %v1178, %v1178
      %v1189 = vsel %vm374, %v1160, 0
      %v1192 = vsel %vm387, %v1183, 0
      %1194 = vmatprep.subr.bf16.mxu0 0
      %1195 = vmatpush1.bf16.msra.mxu0 %v1179
      %1196 = vmatprep.subr.bf16.mxu0 0
      %1197 = vmatpush1.bf16.msra.mxu0 %v1180
      %1198 = vmatprep.subr.bf16.mxu0 0
      %1199 = vmatpush1.bf16.msra.mxu0 %v1181
      %1200 = vmatprep.subr.bf16.mxu0 0
      %1201 = vmatpush1.bf16.msra.mxu0 %v1182
      %1202 = vmatprep.subr.bf16.mxu0 0
      %1203 = vmatpush1.bf16.msra.mxu0 %v1192
      %1204 = vmatprep.subr.bf16.mxu0 0
      %1205 = vmatpush1.bf16.msra.mxu0 0
      %1206 = vmatprep.subr.bf16.mxu0 0
      %1207 = vmatpush1.bf16.msra.mxu0 0
      %1208 = vmatprep.subr.bf16.mxu0 0
      %1209 = vmatpush1.bf16.msra.mxu0 0
      %1210 = vmatprep.subr.bf16.mxu0 0
      %1211 = vmatpush1.bf16.msra.mxu0 0
      %1212 = vmatprep.subr.bf16.mxu0 0
      %1213 = vmatpush1.bf16.msra.mxu0 0
      %1214 = vmatprep.subr.bf16.mxu0 0
      %1215 = vmatpush1.bf16.msra.mxu0 0
      %1216 = vmatprep.subr.bf16.mxu0 0
      %1217 = vmatpush1.bf16.msra.mxu0 0
      %1218 = vmatprep.subr.bf16.mxu0 0
      %1219 = vmatpush1.bf16.msra.mxu0 0
      %1220 = vmatprep.subr.bf16.mxu0 0
      %1221 = vmatpush1.bf16.msra.mxu0 0
      %1222 = vmatprep.subr.bf16.mxu0 0
      %1223 = vmatpush1.bf16.msra.mxu0 0
      %1224 = vmatprep.subr.bf16.mxu0 0
      %1225 = vmatpush1.bf16.msra.mxu0 0
      %1226 = vmatprep.mubr.bf16.mxu0 0
      %1227 = vmatmul.mubr.bf16.gmra.mrb[0].mxu0 %v510
      %v1228 = vpop.f32.mrb[0].mxu0
      %v1229 = vadd.f32 0.0, %v1228
      %v1230 = vpop.f32.mrb[0].mxu0
      %v1231 = vpop.f32.mrb[0].mxu0
      %v1232 = vadd.f32 0.0, %v1231
      %v1233 = vpop.f32.mrb[0].mxu0
      %1234 = vmatprep.mubr.bf16.mxu0 0
      %1235 = vmatmul.mubr.bf16.gmra.mrb[0].mxu0 %v513
      %v1236 = vpop.f32.mrb[0].mxu0
      %v1237 = vadd.f32 0.0, %v1236
      %v1238 = vpop.f32.mrb[0].mxu0
      %v1239 = vpop.f32.mrb[0].mxu0
      %v1240 = vadd.f32 0.0, %v1239
      %v1241 = vpop.f32.mrb[0].mxu0
      %1242 = vmatprep.mubr.bf16.mxu0 0
      %1243 = vmatmul.mubr.bf16.gmra.mrb[0].mxu0 %v798
      %v1244 = vpop.f32.mrb[0].mxu0
      %v1245 = vadd.f32 0.0, %v1244
      %v1246 = vpop.f32.mrb[0].mxu0
      %v1247 = vpop.f32.mrb[0].mxu0
      %v1248 = vadd.f32 0.0, %v1247
      %v1249 = vpop.f32.mrb[0].mxu0
      %1250 = vmatprep.mubr.bf16.mxu0 0
      %1251 = vmatmul.mubr.bf16.gmra.mrb[0].mxu0 %v1189
      %v1252 = vpop.f32.mrb[0].mxu0
      %v1253 = vadd.f32 0.0, %v1252
      %v1254 = vpop.f32.mrb[0].mxu0
      %v1255 = vpop.f32.mrb[0].mxu0
      %v1256 = vadd.f32 0.0, %v1255
      %v1257 = vpop.f32.mrb[0].mxu0
      %1258 = vdwg.mxu0
      %v1259 = vadd.f32 %v1138, %v1229
      %v1260 = vadd.f32 %v1139, %v1232
      %v1261 = vadd.f32 %v1140, %v1237
      %v1262 = vadd.f32 %v1141, %v1240
      %v1263 = vadd.f32 %v1142, %v1245
      %v1264 = vadd.f32 %v1143, %v1248
      %v1265 = vadd.f32 %v1144, %v1253
      %v1266 = vadd.f32 %v1145, %v1256
      %v1268 = vshrl.u32 %v214, 16
      %v1270 = vrot.slane %v1268, 4
      %v1271 = vshll.u32 %v214, 16
      %v1273 = vrot.slane %v1271, 5
      %v1274 = vor.u32 %v1270, %v1273
      %v1275 = vrot.slane %v1274, 4
      %v1277 = vshll.u32 %v215, 16
      %v1279 = vrot.slane %v1277, 5
      %v1280 = vsel %vm228, %v1275, %v1279
      %v1281 = vshrl.u32 %v215, 16
      %v1283 = vrot.slane %v1281, 4
      %v1284 = vor.u32 %v1283, %v1279
      %v1285 = vrot.slane %v1284, 4
      %v1287 = vshll.u32 %v216, 16
      %v1289 = vrot.slane %v1287, 5
      %v1290 = vsel %vm228, %v1285, %v1289
      %s1291 = scalar_lea.vmem %s1, 252
      %v1292 = vld [vmem:[%s1291] sm:$0xf]
      %v1293 = vld [vmem:[%s1291 + $0x4] sm:$0xf]
      %v1294 = vld [vmem:[%s1291 + $0x8] sm:$0xf]
      %v1295 = vld [vmem:[%s1291 + $0xc] sm:$0xf]
      %v1296 = vld [vmem:[%s1291 + $0x10] sm:$0xf]
      %v1297 = vld [vmem:[%s1291 + $0x14] sm:$0xf]
      %v1298 = vld [vmem:[%s1291 + $0x18] sm:$0xf]
      %v1299 = vld [vmem:[%s1291 + $0x1c] sm:$0xf]
      %v1300 = vld [vmem:[%s1291 + $0x20] sm:$0xf]
      %v1301 = vunpack.c.l.b16 %v1280
      %v1302 = vunpack.c.l.b16 %v1290
      %v1303 = vpack.c.b16 %v1302, %v1301
      %v1313 = vunpack.c.l.b16 %v1292
      %v1314 = vunpack.c.l.b16 %v1293
      %v1315 = vunpack.c.l.b16 %v1294
      %v1316 = vunpack.c.l.b16 %v1295
      %v1317 = vunpack.c.l.b16 %v1296
      %v1318 = vunpack.c.l.b16 %v1297
      %v1319 = vunpack.c.l.b16 %v1298
      %v1320 = vunpack.c.l.b16 %v1299
      %v1321 = vunpack.c.l.b16 %v1300
      %v1322 = vpack.c.b16 %v1314, %v1313
      %v1323 = vpack.c.b16 %v1316, %v1315
      %v1324 = vpack.c.b16 %v1318, %v1317
      %v1325 = vpack.c.b16 %v1320, %v1319
      %v1326 = vpack.c.b16 %v1321, %v1321
      %v1332 = vsel %vm374, %v1303, 0
      %v1335 = vsel %vm387, %v1326, 0
      %1337 = vmatprep.subr.bf16.mxu0 0
      %1338 = vmatpush1.bf16.msra.mxu0 %v1322
      %1339 = vmatprep.subr.bf16.mxu0 0
      %1340 = vmatpush1.bf16.msra.mxu0 %v1323
      %1341 = vmatprep.subr.bf16.mxu0 0
      %1342 = vmatpush1.bf16.msra.mxu0 %v1324
      %1343 = vmatprep.subr.bf16.mxu0 0
      %1344 = vmatpush1.bf16.msra.mxu0 %v1325
      %1345 = vmatprep.subr.bf16.mxu0 0
      %1346 = vmatpush1.bf16.msra.mxu0 %v1335
      %1347 = vmatprep.subr.bf16.mxu0 0
      %1348 = vmatpush1.bf16.msra.mxu0 0
      %1349 = vmatprep.subr.bf16.mxu0 0
      %1350 = vmatpush1.bf16.msra.mxu0 0
      %1351 = vmatprep.subr.bf16.mxu0 0
      %1352 = vmatpush1.bf16.msra.mxu0 0
      %1353 = vmatprep.subr.bf16.mxu0 0
      %1354 = vmatpush1.bf16.msra.mxu0 0
      %1355 = vmatprep.subr.bf16.mxu0 0
      %1356 = vmatpush1.bf16.msra.mxu0 0
      %1357 = vmatprep.subr.bf16.mxu0 0
      %1358 = vmatpush1.bf16.msra.mxu0 0
      %1359 = vmatprep.subr.bf16.mxu0 0
      %1360 = vmatpush1.bf16.msra.mxu0 0
      %1361 = vmatprep.subr.bf16.mxu0 0
      %1362 = vmatpush1.bf16.msra.mxu0 0
      %1363 = vmatprep.subr.bf16.mxu0 0
      %1364 = vmatpush1.bf16.msra.mxu0 0
      %1365 = vmatprep.subr.bf16.mxu0 0
      %1366 = vmatpush1.bf16.msra.mxu0 0
      %1367 = vmatprep.subr.bf16.mxu0 0
      %1368 = vmatpush1.bf16.msra.mxu0 0
      %1369 = vmatprep.mubr.bf16.mxu0 0
      %1370 = vmatmul.mubr.bf16.gmra.mrb[0].mxu0 %v382
      %v1371 = vpop.f32.mrb[0].mxu0
      %v1372 = vadd.f32 0.0, %v1371
      %v1373 = vpop.f32.mrb[0].mxu0
      %v1374 = vpop.f32.mrb[0].mxu0
      %v1375 = vadd.f32 0.0, %v1374
      %v1376 = vpop.f32.mrb[0].mxu0
      %1377 = vmatprep.mubr.bf16.mxu0 0
      %1378 = vmatmul.mubr.bf16.gmra.mrb[0].mxu0 %v385
      %v1379 = vpop.f32.mrb[0].mxu0
      %v1380 = vadd.f32 0.0, %v1379
      %v1381 = vpop.f32.mrb[0].mxu0
      %v1382 = vpop.f32.mrb[0].mxu0
      %v1383 = vadd.f32 0.0, %v1382
      %v1384 = vpop.f32.mrb[0].mxu0
      %1385 = vmatprep.mubr.bf16.mxu0 0
      %1386 = vmatmul.mubr.bf16.gmra.mrb[0].mxu0 %v941
      %v1387 = vpop.f32.mrb[0].mxu0
      %v1388 = vadd.f32 0.0, %v1387
      %v1389 = vpop.f32.mrb[0].mxu0
      %v1390 = vpop.f32.mrb[0].mxu0
      %v1391 = vadd.f32 0.0, %v1390
      %v1392 = vpop.f32.mrb[0].mxu0
      %1393 = vmatprep.mubr.bf16.mxu0 0
      %1394 = vmatmul.mubr.bf16.gmra.mrb[0].mxu0 %v1332
      %v1395 = vpop.f32.mrb[0].mxu0
      %v1396 = vadd.f32 0.0, %v1395
      %v1397 = vpop.f32.mrb[0].mxu0
      %v1398 = vpop.f32.mrb[0].mxu0
      %v1399 = vadd.f32 0.0, %v1398
      %v1400 = vpop.f32.mrb[0].mxu0
      %1401 = vdwg.mxu0
      %v1402 = vadd.f32 %v1259, %v1372
      %v1403 = vadd.f32 %v1260, %v1375
      %v1404 = vadd.f32 %v1261, %v1380
      %v1405 = vadd.f32 %v1262, %v1383
      %v1406 = vadd.f32 %v1263, %v1388
      %v1407 = vadd.f32 %v1264, %v1391
      %v1408 = vadd.f32 %v1265, %v1396
      %v1409 = vadd.f32 %v1266, %v1399
      %v1411 = vrot.slane %v214, 5
      %v1412 = vrot.slane %v1411, 4
      %v1413 = vrot.slane %v215, 5
      %v1414 = vsel %vm589, %v1412, %v1413
      %v1415 = vrot.slane %v1413, 4
      %v1416 = vrot.slane %v216, 5
      %v1417 = vsel %vm589, %v1415, %v1416
      %s1418 = scalar_lea.vmem %s1, 288
      %v1419 = vld [vmem:[%s1418] sm:$0xf]
      %v1420 = vld [vmem:[%s1418 + $0x4] sm:$0xf]
      %v1421 = vld [vmem:[%s1418 + $0x8] sm:$0xf]
      %v1422 = vld [vmem:[%s1418 + $0xc] sm:$0xf]
      %v1423 = vld [vmem:[%s1418 + $0x10] sm:$0xf]
      %v1424 = vld [vmem:[%s1418 + $0x14] sm:$0xf]
      %v1425 = vld [vmem:[%s1418 + $0x18] sm:$0xf]
      %v1426 = vld [vmem:[%s1418 + $0x1c] sm:$0xf]
      %v1427 = vld [vmem:[%s1418 + $0x20] sm:$0xf]
      %v1428 = vunpack.c.l.b16 %v1414
      %v1429 = vunpack.c.l.b16 %v1417
      %v1430 = vpack.c.b16 %v1429, %v1428
      %v1440 = vunpack.c.l.b16 %v1419
      %v1441 = vunpack.c.l.b16 %v1420
      %v1442 = vunpack.c.l.b16 %v1421
      %v1443 = vunpack.c.l.b16 %v1422
      %v1444 = vunpack.c.l.b16 %v1423
      %v1445 = vunpack.c.l.b16 %v1424
      %v1446 = vunpack.c.l.b16 %v1425
      %v1447 = vunpack.c.l.b16 %v1426
      %v1448 = vunpack.c.l.b16 %v1427
      %v1449 = vpack.c.b16 %v1441, %v1440
      %v1450 = vpack.c.b16 %v1443, %v1442
      %v1451 = vpack.c.b16 %v1445, %v1444
      %v1452 = vpack.c.b16 %v1447, %v1446
      %v1453 = vpack.c.b16 %v1448, %v1448
      %v1459 = vsel %vm374, %v1430, 0
      %v1462 = vsel %vm387, %v1453, 0
      %1464 = vmatprep.subr.bf16.mxu0 0
      %1465 = vmatpush1.bf16.msra.mxu0 %v1449
      %1466 = vmatprep.subr.bf16.mxu0 0
      %1467 = vmatpush1.bf16.msra.mxu0 %v1450
      %1468 = vmatprep.subr.bf16.mxu0 0
      %1469 = vmatpush1.bf16.msra.mxu0 %v1451
      %1470 = vmatprep.subr.bf16.mxu0 0
      %1471 = vmatpush1.bf16.msra.mxu0 %v1452
      %1472 = vmatprep.subr.bf16.mxu0 0
      %1473 = vmatpush1.bf16.msra.mxu0 %v1462
      %1474 = vmatprep.subr.bf16.mxu0 0
      %1475 = vmatpush1.bf16.msra.mxu0 0
      %1476 = vmatprep.subr.bf16.mxu0 0
      %1477 = vmatpush1.bf16.msra.mxu0 0
      %1478 = vmatprep.subr.bf16.mxu0 0
      %1479 = vmatpush1.bf16.msra.mxu0 0
      %1480 = vmatprep.subr.bf16.mxu0 0
      %1481 = vmatpush1.bf16.msra.mxu0 0
      %1482 = vmatprep.subr.bf16.mxu0 0
      %1483 = vmatpush1.bf16.msra.mxu0 0
      %1484 = vmatprep.subr.bf16.mxu0 0
      %1485 = vmatpush1.bf16.msra.mxu0 0
      %1486 = vmatprep.subr.bf16.mxu0 0
      %1487 = vmatpush1.bf16.msra.mxu0 0
      %1488 = vmatprep.subr.bf16.mxu0 0
      %1489 = vmatpush1.bf16.msra.mxu0 0
      %1490 = vmatprep.subr.bf16.mxu0 0
      %1491 = vmatpush1.bf16.msra.mxu0 0
      %1492 = vmatprep.subr.bf16.mxu0 0
      %1493 = vmatpush1.bf16.msra.mxu0 0
      %1494 = vmatprep.subr.bf16.mxu0 0
      %1495 = vmatpush1.bf16.msra.mxu0 0
      %1496 = vmatprep.mubr.bf16.mxu0 0
      %1497 = vmatmul.mubr.bf16.gmra.mrb[0].mxu0 %v674
      %v1498 = vpop.f32.mrb[0].mxu0
      %v1499 = vadd.f32 0.0, %v1498
      %v1500 = vpop.f32.mrb[0].mxu0
      %v1501 = vpop.f32.mrb[0].mxu0
      %v1502 = vadd.f32 0.0, %v1501
      %v1503 = vpop.f32.mrb[0].mxu0
      %1504 = vmatprep.mubr.bf16.mxu0 0
      %1505 = vmatmul.mubr.bf16.gmra.mrb[0].mxu0 %v677
      %v1506 = vpop.f32.mrb[0].mxu0
      %v1507 = vadd.f32 0.0, %v1506
      %v1508 = vpop.f32.mrb[0].mxu0
      %v1509 = vpop.f32.mrb[0].mxu0
      %v1510 = vadd.f32 0.0, %v1509
      %v1511 = vpop.f32.mrb[0].mxu0
      %1512 = vmatprep.mubr.bf16.mxu0 0
      %1513 = vmatmul.mubr.bf16.gmra.mrb[0].mxu0 %v1068
      %v1514 = vpop.f32.mrb[0].mxu0
      %v1515 = vadd.f32 0.0, %v1514
      %v1516 = vpop.f32.mrb[0].mxu0
      %v1517 = vpop.f32.mrb[0].mxu0
      %v1518 = vadd.f32 0.0, %v1517
      %v1519 = vpop.f32.mrb[0].mxu0
      %1520 = vmatprep.mubr.bf16.mxu0 0
      %1521 = vmatmul.mubr.bf16.gmra.mrb[0].mxu0 %v1459
      %v1522 = vpop.f32.mrb[0].mxu0
      %v1523 = vadd.f32 0.0, %v1522
      %v1524 = vpop.f32.mrb[0].mxu0
      %v1525 = vpop.f32.mrb[0].mxu0
      %v1526 = vadd.f32 0.0, %v1525
      %v1527 = vpop.f32.mrb[0].mxu0
      %1528 = vdwg.mxu0
      %v1529 = vadd.f32 %v1402, %v1499
      %v1530 = vadd.f32 %v1403, %v1502
      %v1531 = vadd.f32 %v1404, %v1507
      %v1532 = vadd.f32 %v1405, %v1510
      %v1533 = vadd.f32 %v1406, %v1515
      %v1534 = vadd.f32 %v1407, %v1518
      %v1535 = vadd.f32 %v1408, %v1523
      %v1536 = vadd.f32 %v1409, %v1526
      %v1537 = vld [vmem:[%s2] sm:$0x1]
      %v1539 = vlaneseq
      %v1540 = vshrl.u32 %v1539, 7
      %v1541 = vsub.s32 0, %v1540
      %v1542 = vrot.slane %v1537, %v1541
      %v1544 = vadd.f32 %v1529, %v1542
      %v1545 = vadd.f32 %v1530, %v1542
      %v1546 = vadd.f32 %v1531, %v1542
      %v1547 = vadd.f32 %v1532, %v1542
      %v1548 = vadd.f32 %v1533, %v1542
      %v1549 = vadd.f32 %v1534, %v1542
      %v1550 = vadd.f32 %v1535, %v1542
      %v1551 = vadd.f32 %v1536, %v1542
      %vm1552 = vcmp.ge.f32.partialorder %v1544, 0.0
      %vm1553 = vcmp.ge.f32.partialorder %v1545, 0.0
      %vm1554 = vcmp.ge.f32.partialorder %v1546, 0.0
      %vm1555 = vcmp.ge.f32.partialorder %v1547, 0.0
      %vm1556 = vcmp.ge.f32.partialorder %v1548, 0.0
      %vm1557 = vcmp.ge.f32.partialorder %v1549, 0.0
      %vm1558 = vcmp.ge.f32.partialorder %v1550, 0.0
      %vm1559 = vcmp.ge.f32.partialorder %v1551, 0.0
      %v1560 = vmul.f32 %v1544, 0.2
      %v1561 = vmul.f32 %v1545, 0.2
      %v1562 = vmul.f32 %v1546, 0.2
      %v1563 = vmul.f32 %v1547, 0.2
      %v1564 = vmul.f32 %v1548, 0.2
      %v1565 = vmul.f32 %v1549, 0.2
      %v1566 = vmul.f32 %v1550, 0.2
      %v1567 = vmul.f32 %v1551, 0.2
      %v1568 = vsel %vm1552, %v1544, %v1560
      %v1569 = vsel %vm1553, %v1545, %v1561
      %v1570 = vsel %vm1554, %v1546, %v1562
      %v1571 = vsel %vm1555, %v1547, %v1563
      %v1572 = vsel %vm1556, %v1548, %v1564
      %v1573 = vsel %vm1557, %v1549, %v1565
      %v1574 = vsel %vm1558, %v1550, %v1566
      %v1575 = vsel %vm1559, %v1551, %v1567
      %1576 = vst [vmem:[%s192] sm:$0xff] %v1568
      %1577 = vst [vmem:[%s192 + $0x8] sm:$0xff] %v1569
      %1578 = vst [vmem:[%s192 + $0x10] sm:$0xff] %v1570
      %1579 = vst [vmem:[%s192 + $0x18] sm:$0xff] %v1571
      %1580 = vst [vmem:[%s192 + $0x20] sm:$0xff] %v1572
      %1581 = vst [vmem:[%s192 + $0x28] sm:$0xff] %v1573
      %1582 = vst [vmem:[%s192 + $0x30] sm:$0xff] %v1574
      %1583 = vst [vmem:[%s192 + $0x38] sm:$0xff] %v1575
      %s1584 = smul.u32 8, %s19
      %p1585 = scmp.lt.s32.totalorder %s18, 1
      %s1586 = scalar_select %p1585, %s18, 1
      %p1587 = scmp.lt.s32.totalorder %s1584, 15
      %s1588 = scalar_select %p1587, %s1584, 15
      %s1589 = smul.addr %s1586, 16
      %s1590 = sadd.s32 %s1588, %s1589
      %s1591 = smul.addr %s1590, 8
      %s1592 = scalar_lea.vmem %s3, %s1591
      // Predicated region
      $region33: #{conv_block_forward.1} parent=31 // pred_check
        %p1593 = pneg %p114
      $region34: #{conv_block_forward.1} parent=31 // pred_check_branch
        %1595 = sbr.rel (%p1593) target = $region36
      $region35: #{conv_block_forward.1} parent=31 // pred_region
        %s1596 = smul.u32 8, %s19
      $region36: #{conv_block_forward.1} parent=31 // pred_fallthru
        _
    $region32: #{conv_block_forward.1} parent=5 // pred_fallthru
      _
    %p1597 = scmp.le.s32.totalorder 2, %s9
    // Predicated region
    $region37: #{conv_block_forward.1} parent=5 // pred_check
      %p1598 = pneg %p1597
    $region38: #{conv_block_forward.1} parent=5 // pred_check_branch
      %1600 = sbr.rel (%p1598) target = $region40
    $region39: #{conv_block_forward.1} parent=5 // pred_region
      %s1601 = ssub.s32 %s9, 2
      // Predicated region
      $region41: #{conv_block_forward.1} parent=39 // pred_check
        %p1602 = pneg %p120
      $region42: #{conv_block_forward.1} parent=39 // pred_check_branch
        %1604 = sbr.rel (%p1602) target = $region44
      $region43: #{conv_block_forward.1} parent=39 // pred_region
        %s1605 = smul.u32 8, %s21
        %p1606 = scmp.lt.s32.totalorder %s20, 1
        %s1607 = scalar_select %p1606, %s20, 1
        %p1608 = scmp.lt.s32.totalorder %s1605, 15
        %s1609 = scalar_select %p1608, %s1605, 15
        %s1610 = smul.addr %s1607, 16
        %s1611 = sadd.s32 %s1609, %s1610
        %s1612 = smul.addr %s1611, 8
        %s1613 = scalar_lea.vmem %s3, %s1612
      $region44: #{conv_block_forward.1} parent=39 // pred_fallthru
        _
    $region40: #{conv_block_forward.1} parent=5 // pred_fallthru
      _
  $region6: #{conv_block_forward.1} parent=0 // loop_footer
    %s13 = sadd.s32 1, %s9
  $region7: #{conv_block_forward.1} parent=0 // loop_footer_branch
    %8 = sbr.rel target = $region3
  $region8: #{conv_block_forward.1} parent=0 // loop_exit
    _

</llo_original>
